<compile_context>
chip_gen: v5e
topology: v5e:2x2
jax: 0.10.0
libtpu: 0.0.40
codegen_flags: <defaults>
</compile_context>

<pallas_src>
import jax
import jax.numpy as jnp
import numpy as np
from jax.experimental import pallas as pl
from jax.experimental.pallas import tpu as pltpu


# ------------------------------ fused kernel --------------------------------
def _make_gat_kernel(neg_slope):
    """Returns the fused kernel body; all static shapes are read off the refs."""

    def attention(z, ar_m, al_m, hmask, adj):
        # z: [Ns, HDP] projected src features (dst nodes are the first rows)
        # ar_m: [HDP, H], al_m: [H, HDP], hmask: [H, HDP], adj: [Nd, Ns]
        n_dst = adj.shape[0]
        num_heads = hmask.shape[0]
        # All heads' dst scores in one MXU matmul: er_all[:, h] = sum_d z_h*ar_h
        er_all = jnp.dot(z, ar_m, preferred_element_type=jnp.float32)      # [Ns, H]
        # All heads' src scores directly in row layout (no per-head z.T):
        el_all = jnp.einsum('hf,nf->hn', al_m, z,
                            preferred_element_type=jnp.float32)            # [H, Ns]
        keep = adj > 0.0
        acc = None
        for h in range(num_heads):
            e = er_all[:n_dst, h:h + 1] + el_all[h:h + 1, :]               # [Nd, Ns]
            e = jnp.maximum(e, neg_slope * e)                              # LeakyReLU
            e = jnp.where(keep, e, jnp.float32(-1e30))                     # edge mask
            m = jnp.max(e, axis=1, keepdims=True)
            p = jnp.where(keep, jnp.exp(e - m), 0.0)       # guard isolated dst rows
            denom = jnp.sum(p, axis=1, keepdims=True) + jnp.float32(1e-20)
            alpha = p * (1.0 / denom)                                      # edge softmax
            # hmask keeps head h's result in its own column block, so heads
            # accumulate straight into the flattened-concat layout
            # (no lane slicing of z, no concatenation).
            rst = jnp.dot(alpha, z * hmask[h:h + 1, :],
                          preferred_element_type=jnp.float32)              # [Nd, HDP]
            acc = rst if acc is None else acc + rst
        return acc

    def kernel(uw_ref, w1e_ref, ar1_ref, al1_ref, hm1_ref, b1_ref, adj1_ref,
               w2_ref, ar2_ref, al2_ref, hm2_ref, b2_ref, adj2_ref, fold_ref,
               out_ref):
        iw, n_src, _ = uw_ref.shape
        v_pad = w1e_ref.shape[0]

        # -- fused embedding lookup + word/item mean + gat1 fc ----------------
        #   mean_{i,w} emb[uw] @ W1  ==  counts @ ((emb @ W1) / (I*W))
        uw = uw_ref[...]                                            # [IW, Ns, 1] i32
        vocab = jax.lax.broadcasted_iota(jnp.int32, (iw, n_src, v_pad), 2)
        hits = (uw == vocab).astype(jnp.float32)                    # one fused compare
        counts = hits[0]
        for k in range(1, iw):                                      # dense vreg adds
            counts = counts + hits[k]                               # [Ns, Vp]
        z1 = jnp.dot(counts, w1e_ref[...],
                     preferred_element_type=jnp.float32)            # [Ns, HD1P]

        # -- GAT layer 1: multi-head, concat heads, ELU -----------------------
        x1 = attention(z1, ar1_ref[...], al1_ref[...], hm1_ref[...],
                       adj1_ref[...]) + b1_ref[...]
        # ELU (exp(min(x,0)) - 1; expm1 avoided for lowering compatibility).
        x1 = jnp.where(x1 > 0.0, x1, jnp.exp(jnp.minimum(x1, 0.0)) - 1.0)

        # -- GAT layer 2: multi-head, mean over heads folded into `fold` ------
        z2 = jnp.dot(x1, w2_ref[...], preferred_element_type=jnp.float32)
        r2 = attention(z2, ar2_ref[...], al2_ref[...], hm2_ref[...],
                       adj2_ref[...]) + b2_ref[...]
        # Head mean (1/H inside `fold`) + lane-dense [ND2P, 128] output store.
        out_ref[...] = jnp.dot(r2, fold_ref[...],
                               preferred_element_type=jnp.float32)

    return kernel


# ------------------------------ host wrapper --------------------------------
def _round_up(x, m):
    return ((x + m - 1) // m) * m


def gat_forward(user_word, emb, w1, al1, ar1, b1, adj1,
                w2, al2, ar2, b2, adj2, negative_slope=0.2):
    """user_word: [N_src, I, W] int word ids. Returns [n_dst2, out_size] f32."""
    hp = jax.lax.Precision.HIGHEST
    n_src = user_word.shape[0]
    iw = int(np.prod(user_word.shape[1:]))
    vocab = emb.shape[0]
    h1, d1 = al1.shape
    h2, out_size = al2.shape
    nd1, nd2 = adj1.shape[0], adj2.shape[0]
    hd1, hd2 = h1 * d1, h2 * out_size

    # (8,128)-friendly padded sizes; result is sliced back after the kernel.
    NSRC, ND1P, ND2P = _round_up(n_src, 8), _round_up(nd1, 8), _round_up(nd2, 8)
    VP = _round_up(vocab, 128)
    HD1P = _round_up(hd1, 128)
    HD2P = _round_up(hd2, 128)
    OUTP = _round_up(out_size, 128)

    # ---- host-side algebraic folding (emb table & weights are fixed) -------
    w1_eff = jnp.dot(emb, w1, precision=hp) * (1.0 / iw)        # (emb @ W1) / (I*W)
    w1_eff = jnp.pad(w1_eff, ((0, VP - vocab), (0, HD1P - hd1)))

    def right_mat(attn, hdp):          # [HDP, H]: column h holds attn_r of head h
        h, d = attn.shape
        m = np.zeros((hdp, h), np.float32)
        for i in range(h):
            m[i * d:(i + 1) * d, i] = np.asarray(attn[i])
        return jnp.asarray(m)

    def left_mat(attn, hdp):           # [H, HDP]: row h holds attn_l of head h
        h, d = attn.shape
        m = np.zeros((h, hdp), np.float32)
        for i in range(h):
            m[i, i * d:(i + 1) * d] = np.asarray(attn[i])
        return jnp.asarray(m)

    def head_mask(h, d, hdp):          # [H, HDP]: 1.0 on head h's column block
        m = np.zeros((h, hdp), np.float32)
        for i in range(h):
            m[i, i * d:(i + 1) * d] = 1.0
        return jnp.asarray(m)

    ar1_m, al1_m = right_mat(ar1, HD1P), left_mat(al1, HD1P)
    ar2_m, al2_m = right_mat(ar2, HD2P), left_mat(al2, HD2P)
    hm1, hm2 = head_mask(h1, d1, HD1P), head_mask(h2, out_size, HD2P)
    b1_f = jnp.pad(b1.reshape(1, hd1), ((0, 0), (0, HD1P - hd1)))
    b2_f = jnp.pad(b2.reshape(1, hd2), ((0, 0), (0, HD2P - hd2)))
    w2_p = jnp.pad(w2, ((0, HD1P - hd1), (0, HD2P - hd2)))

    # Head-mean fold matrix (1/H inside), zero-padded to a lane-dense output.
    fold = jnp.tile(jnp.eye(out_size, dtype=jnp.float32), (h2, 1)) / float(h2)
    fold = jnp.pad(fold, ((0, HD2P - hd2), (0, OUTP - out_size)))

    # Dense masked adjacencies; padded rows/cols carry no edges.
    adj1_p = jnp.pad(adj1.astype(jnp.float32), ((0, ND1P - nd1), (0, NSRC - n_src)))
    adj2_p = jnp.pad(adj2.astype(jnp.float32), ((0, ND2P - nd2), (0, ND1P - nd1)))

    # Word ids pre-shaped to [IW, Nsrc, 1] so the in-kernel one-hot build is a
    # minor-dim broadcast compare (no in-kernel relayout / transpose).
    uw = jnp.pad(user_word.reshape(n_src, iw).astype(jnp.int32),
                 ((0, NSRC - n_src), (0, 0)))
    uw_t = jnp.transpose(uw)[:, :, None]

    inputs = (uw_t, w1_eff, ar1_m, al1_m, hm1, b1_f, adj1_p,
              w2_p, ar2_m, al2_m, hm2, b2_f, adj2_p, fold)

    flops = 2 * (NSRC * VP * HD1P + 2 * h1 * NSRC * HD1P
                 + h1 * ND1P * NSRC * HD1P + ND1P * HD1P * HD2P
                 + 2 * h2 * ND1P * HD2P + h2 * ND2P * ND1P * HD2P
                 + ND2P * HD2P * OUTP)
    transcendentals = h1 * ND1P * NSRC + h2 * ND2P * ND1P + ND1P * HD1P
    bytes_accessed = sum(int(a.size) * a.dtype.itemsize for a in inputs) \
        + ND2P * OUTP * 4

    vmem = pl.BlockSpec(memory_space=pltpu.MemorySpace.VMEM)
    out = pl.pallas_call(
        _make_gat_kernel(float(negative_slope)),
        out_shape=jax.ShapeDtypeStruct((ND2P, OUTP), jnp.float32),
        in_specs=[vmem] * len(inputs),
        out_specs=vmem,
        cost_estimate=pl.CostEstimate(flops=int(flops),
                                      transcendentals=int(transcendentals),
                                      bytes_accessed=int(bytes_accessed)),
    )(*inputs)
    return out[:nd2, :out_size]


# ------------------------------ reference / glue -----------------------------
def xavier_uniform(key, shape):
    bound = float(np.sqrt(6.0 / (shape[0] + shape[1])))
    return jax.random.uniform(key, shape, jnp.float32, -bound, bound)


def make_block_adj(key, n_dst, n_src):
    """Dense binary [n_dst, n_src] block adjacency; each dst keeps a self edge
    (DGL blocks: dst nodes are a prefix of src nodes), so no dst is isolated."""
    a = (jax.random.uniform(key, (n_dst, n_src)) < 0.4).astype(jnp.float32)
    eye = jnp.eye(n_dst, n_src, dtype=jnp.float32)
    return jnp.maximum(a, eye)


def reference_forward(user_word_3d, emb, w1, al1, ar1, b1, adj1,
                      w2, al2, ar2, b2, adj2, neg_slope):
    """Pure-JAX reference of the PyTorch GAT forward (eval mode, residual=False)."""
    hp = jax.lax.Precision.HIGHEST
    wf = emb[user_word_3d]                       # [N, I, W, E]
    x = wf.mean(axis=2).mean(axis=1)             # mean over words, then items

    def gat_layer(x_src, w, al, ar, b, adj):
        H, D = al.shape
        n_dst = adj.shape[0]
        z = jnp.dot(x_src, w, precision=hp).reshape(-1, H, D)          # [Ns, H, D]
        el = jnp.einsum('nhd,hd->hn', z, al, precision=hp)             # [H, Ns]
        er = jnp.einsum('mhd,hd->hm', z[:n_dst], ar, precision=hp)     # [H, Nd]
        e = er[:, :, None] + el[:, None, :]                            # [H, Nd, Ns]
        e = jnp.where(e >= 0.0, e, neg_slope * e)
        e = jnp.where(adj[None] > 0.0, e, -1e30)
        alpha = jax.nn.softmax(e, axis=-1)
        rst = jnp.einsum('hmn,nhd->mhd', alpha, z, precision=hp) + b[None]
        return rst                                                     # [Nd, H, D]

    r1 = gat_layer(x, w1, al1, ar1, b1, adj1)
    x1 = jax.nn.elu(r1.reshape(r1.shape[0], -1))        # activation + flatten(1)
    r2 = gat_layer(x1, w2, al2, ar2, b2, adj2)
    return r2.mean(axis=1)                              # mean over heads


if __name__ == "__main__":
    key = jax.random.PRNGKey(0)
    ks = jax.random.split(key, 16)

    # Small shapes consistent with the module's forward pass.
    N_SRC, N_DST1, N_DST2 = 16, 12, 6        # blocks[0] src/dst, blocks[1] dst
    I, W = 4, 6                              # items per user, words per item
    VOCAB, E = 50, 24                        # word_feature table; in_size == E
    HIDDEN, OUT_SIZE = 16, 16
    HEADS = (2, 2)
    NEG_SLOPE = 0.2                          # feat/attn drop = 0 (eval), residual=False

    emb_table = jax.random.normal(ks[0], (VOCAB, E), jnp.float32)
    user_word = jax.random.randint(ks[1], (N_SRC, I, W), 0, VOCAB, jnp.int32)

    w1 = xavier_uniform(ks[2], (E, HEADS[0] * HIDDEN))
    al1 = xavier_uniform(ks[3], (HEADS[0], HIDDEN))
    ar1 = xavier_uniform(ks[4], (HEADS[0], HIDDEN))
    b1 = 0.1 * jax.random.normal(ks[11], (HEADS[0], HIDDEN), jnp.float32)
    w2 = xavier_uniform(ks[5], (HEADS[0] * HIDDEN, HEADS[1] * OUT_SIZE))
    al2 = xavier_uniform(ks[6], (HEADS[1], OUT_SIZE))
    ar2 = xavier_uniform(ks[7], (HEADS[1], OUT_SIZE))
    b2 = 0.1 * jax.random.normal(ks[12], (HEADS[1], OUT_SIZE), jnp.float32)

    adj1 = make_block_adj(ks[8], N_DST1, N_SRC)     # blocks[0] as dense mask
    adj2 = make_block_adj(ks[9], N_DST2, N_DST1)    # blocks[1] as dense mask
    labels = jax.random.randint(ks[10], (N_DST2,), 0, 3, jnp.int32)

    # ---- forward (single fused Pallas kernel) ----
    x = gat_forward(user_word, emb_table, w1, al1, ar1, b1, adj1,
                    w2, al2, ar2, b2, adj2, negative_slope=NEG_SLOPE)
    jax.block_until_ready((x, labels))

    # Correctness check against a pure-JAX reference of the PyTorch semantics.
    ref = reference_forward(user_word, emb_table, w1, al1, ar1, b1, adj1,
                            w2, al2, ar2, b2, adj2, NEG_SLOPE)
    np.testing.assert_allclose(np.asarray(x), np.asarray(ref),
                               rtol=1e-3, atol=1e-3)
    assert x.shape == (N_DST2, OUT_SIZE) and labels.shape == (N_DST2,)
    print("KERNEL_OK")
</pallas_src>

<mosaic_0001>
module attributes {stable_mosaic.version = 11 : i64} {
  func.func @kernel(%arg0: memref<24x16x1xi32, #tpu.memory_space<vmem>>, %arg1: memref<128x128xf32, #tpu.memory_space<vmem>>, %arg2: memref<128x2xf32, #tpu.memory_space<vmem>>, %arg3: memref<2x128xf32, #tpu.memory_space<vmem>>, %arg4: memref<2x128xf32, #tpu.memory_space<vmem>>, %arg5: memref<1x128xf32, #tpu.memory_space<vmem>>, %arg6: memref<16x16xf32, #tpu.memory_space<vmem>>, %arg7: memref<128x128xf32, #tpu.memory_space<vmem>>, %arg8: memref<128x2xf32, #tpu.memory_space<vmem>>, %arg9: memref<2x128xf32, #tpu.memory_space<vmem>>, %arg10: memref<2x128xf32, #tpu.memory_space<vmem>>, %arg11: memref<1x128xf32, #tpu.memory_space<vmem>>, %arg12: memref<8x16xf32, #tpu.memory_space<vmem>>, %arg13: memref<128x128xf32, #tpu.memory_space<vmem>>, %arg14: memref<8x128xf32, #tpu.memory_space<vmem>>) attributes {dimension_semantics = [], scalar_prefetch = 0 : i64, scratch_operands = 0 : i64, tpu.core_type = #tpu.core_type<tc>} {
    %c0 = arith.constant 0 : index
    %c0_0 = arith.constant 0 : index
    %c0_1 = arith.constant 0 : index
    %0 = vector.load %arg0[%c0, %c0_0, %c0_1] : memref<24x16x1xi32, #tpu.memory_space<vmem>>, vector<24x16x1xi32>
    %1 = tpu.iota {dimensions = array<i32: 2>} : vector<24x16x128xi32>
    %2 = vector.broadcast %0 : vector<24x16x1xi32> to vector<24x16x128xi32>
    %3 = arith.cmpi eq, %2, %1 : vector<24x16x128xi32>
    %4 = arith.extui %3 : vector<24x16x128xi1> to vector<24x16x128xi32>
    %5 = arith.sitofp %4 : vector<24x16x128xi32> to vector<24x16x128xf32>
    %6 = vector.extract_strided_slice %5 {offsets = [0, 0, 0], sizes = [1, 16, 128], strides = [1, 1, 1]} : vector<24x16x128xf32> to vector<1x16x128xf32>
    %7 = vector.shape_cast %6 : vector<1x16x128xf32> to vector<16x128xf32>
    %8 = vector.extract_strided_slice %5 {offsets = [1, 0, 0], sizes = [1, 16, 128], strides = [1, 1, 1]} : vector<24x16x128xf32> to vector<1x16x128xf32>
    %9 = vector.shape_cast %8 : vector<1x16x128xf32> to vector<16x128xf32>
    %10 = arith.addf %7, %9 : vector<16x128xf32>
    %11 = vector.extract_strided_slice %5 {offsets = [2, 0, 0], sizes = [1, 16, 128], strides = [1, 1, 1]} : vector<24x16x128xf32> to vector<1x16x128xf32>
    %12 = vector.shape_cast %11 : vector<1x16x128xf32> to vector<16x128xf32>
    %13 = arith.addf %10, %12 : vector<16x128xf32>
    %14 = vector.extract_strided_slice %5 {offsets = [3, 0, 0], sizes = [1, 16, 128], strides = [1, 1, 1]} : vector<24x16x128xf32> to vector<1x16x128xf32>
    %15 = vector.shape_cast %14 : vector<1x16x128xf32> to vector<16x128xf32>
    %16 = arith.addf %13, %15 : vector<16x128xf32>
    %17 = vector.extract_strided_slice %5 {offsets = [4, 0, 0], sizes = [1, 16, 128], strides = [1, 1, 1]} : vector<24x16x128xf32> to vector<1x16x128xf32>
    %18 = vector.shape_cast %17 : vector<1x16x128xf32> to vector<16x128xf32>
    %19 = arith.addf %16, %18 : vector<16x128xf32>
    %20 = vector.extract_strided_slice %5 {offsets = [5, 0, 0], sizes = [1, 16, 128], strides = [1, 1, 1]} : vector<24x16x128xf32> to vector<1x16x128xf32>
    %21 = vector.shape_cast %20 : vector<1x16x128xf32> to vector<16x128xf32>
    %22 = arith.addf %19, %21 : vector<16x128xf32>
    %23 = vector.extract_strided_slice %5 {offsets = [6, 0, 0], sizes = [1, 16, 128], strides = [1, 1, 1]} : vector<24x16x128xf32> to vector<1x16x128xf32>
    %24 = vector.shape_cast %23 : vector<1x16x128xf32> to vector<16x128xf32>
    %25 = arith.addf %22, %24 : vector<16x128xf32>
    %26 = vector.extract_strided_slice %5 {offsets = [7, 0, 0], sizes = [1, 16, 128], strides = [1, 1, 1]} : vector<24x16x128xf32> to vector<1x16x128xf32>
    %27 = vector.shape_cast %26 : vector<1x16x128xf32> to vector<16x128xf32>
    %28 = arith.addf %25, %27 : vector<16x128xf32>
    %29 = vector.extract_strided_slice %5 {offsets = [8, 0, 0], sizes = [1, 16, 128], strides = [1, 1, 1]} : vector<24x16x128xf32> to vector<1x16x128xf32>
    %30 = vector.shape_cast %29 : vector<1x16x128xf32> to vector<16x128xf32>
    %31 = arith.addf %28, %30 : vector<16x128xf32>
    %32 = vector.extract_strided_slice %5 {offsets = [9, 0, 0], sizes = [1, 16, 128], strides = [1, 1, 1]} : vector<24x16x128xf32> to vector<1x16x128xf32>
    %33 = vector.shape_cast %32 : vector<1x16x128xf32> to vector<16x128xf32>
    %34 = arith.addf %31, %33 : vector<16x128xf32>
    %35 = vector.extract_strided_slice %5 {offsets = [10, 0, 0], sizes = [1, 16, 128], strides = [1, 1, 1]} : vector<24x16x128xf32> to vector<1x16x128xf32>
    %36 = vector.shape_cast %35 : vector<1x16x128xf32> to vector<16x128xf32>
    %37 = arith.addf %34, %36 : vector<16x128xf32>
    %38 = vector.extract_strided_slice %5 {offsets = [11, 0, 0], sizes = [1, 16, 128], strides = [1, 1, 1]} : vector<24x16x128xf32> to vector<1x16x128xf32>
    %39 = vector.shape_cast %38 : vector<1x16x128xf32> to vector<16x128xf32>
    %40 = arith.addf %37, %39 : vector<16x128xf32>
    %41 = vector.extract_strided_slice %5 {offsets = [12, 0, 0], sizes = [1, 16, 128], strides = [1, 1, 1]} : vector<24x16x128xf32> to vector<1x16x128xf32>
    %42 = vector.shape_cast %41 : vector<1x16x128xf32> to vector<16x128xf32>
    %43 = arith.addf %40, %42 : vector<16x128xf32>
    %44 = vector.extract_strided_slice %5 {offsets = [13, 0, 0], sizes = [1, 16, 128], strides = [1, 1, 1]} : vector<24x16x128xf32> to vector<1x16x128xf32>
    %45 = vector.shape_cast %44 : vector<1x16x128xf32> to vector<16x128xf32>
    %46 = arith.addf %43, %45 : vector<16x128xf32>
    %47 = vector.extract_strided_slice %5 {offsets = [14, 0, 0], sizes = [1, 16, 128], strides = [1, 1, 1]} : vector<24x16x128xf32> to vector<1x16x128xf32>
    %48 = vector.shape_cast %47 : vector<1x16x128xf32> to vector<16x128xf32>
    %49 = arith.addf %46, %48 : vector<16x128xf32>
    %50 = vector.extract_strided_slice %5 {offsets = [15, 0, 0], sizes = [1, 16, 128], strides = [1, 1, 1]} : vector<24x16x128xf32> to vector<1x16x128xf32>
    %51 = vector.shape_cast %50 : vector<1x16x128xf32> to vector<16x128xf32>
    %52 = arith.addf %49, %51 : vector<16x128xf32>
    %53 = vector.extract_strided_slice %5 {offsets = [16, 0, 0], sizes = [1, 16, 128], strides = [1, 1, 1]} : vector<24x16x128xf32> to vector<1x16x128xf32>
    %54 = vector.shape_cast %53 : vector<1x16x128xf32> to vector<16x128xf32>
    %55 = arith.addf %52, %54 : vector<16x128xf32>
    %56 = vector.extract_strided_slice %5 {offsets = [17, 0, 0], sizes = [1, 16, 128], strides = [1, 1, 1]} : vector<24x16x128xf32> to vector<1x16x128xf32>
    %57 = vector.shape_cast %56 : vector<1x16x128xf32> to vector<16x128xf32>
    %58 = arith.addf %55, %57 : vector<16x128xf32>
    %59 = vector.extract_strided_slice %5 {offsets = [18, 0, 0], sizes = [1, 16, 128], strides = [1, 1, 1]} : vector<24x16x128xf32> to vector<1x16x128xf32>
    %60 = vector.shape_cast %59 : vector<1x16x128xf32> to vector<16x128xf32>
    %61 = arith.addf %58, %60 : vector<16x128xf32>
    %62 = vector.extract_strided_slice %5 {offsets = [19, 0, 0], sizes = [1, 16, 128], strides = [1, 1, 1]} : vector<24x16x128xf32> to vector<1x16x128xf32>
    %63 = vector.shape_cast %62 : vector<1x16x128xf32> to vector<16x128xf32>
    %64 = arith.addf %61, %63 : vector<16x128xf32>
    %65 = vector.extract_strided_slice %5 {offsets = [20, 0, 0], sizes = [1, 16, 128], strides = [1, 1, 1]} : vector<24x16x128xf32> to vector<1x16x128xf32>
    %66 = vector.shape_cast %65 : vector<1x16x128xf32> to vector<16x128xf32>
    %67 = arith.addf %64, %66 : vector<16x128xf32>
    %68 = vector.extract_strided_slice %5 {offsets = [21, 0, 0], sizes = [1, 16, 128], strides = [1, 1, 1]} : vector<24x16x128xf32> to vector<1x16x128xf32>
    %69 = vector.shape_cast %68 : vector<1x16x128xf32> to vector<16x128xf32>
    %70 = arith.addf %67, %69 : vector<16x128xf32>
    %71 = vector.extract_strided_slice %5 {offsets = [22, 0, 0], sizes = [1, 16, 128], strides = [1, 1, 1]} : vector<24x16x128xf32> to vector<1x16x128xf32>
    %72 = vector.shape_cast %71 : vector<1x16x128xf32> to vector<16x128xf32>
    %73 = arith.addf %70, %72 : vector<16x128xf32>
    %74 = vector.extract_strided_slice %5 {offsets = [23, 0, 0], sizes = [1, 16, 128], strides = [1, 1, 1]} : vector<24x16x128xf32> to vector<1x16x128xf32>
    %75 = vector.shape_cast %74 : vector<1x16x128xf32> to vector<16x128xf32>
    %76 = arith.addf %73, %75 : vector<16x128xf32>
    %c0_2 = arith.constant 0 : index
    %c0_3 = arith.constant 0 : index
    %77 = vector.load %arg1[%c0_2, %c0_3] : memref<128x128xf32, #tpu.memory_space<vmem>>, vector<128x128xf32>
    %cst = arith.constant dense<0.000000e+00> : vector<16x128xf32>
    %78 = tpu.matmul %76, %77, %cst {dimension_numbers = #tpu.dot_dimension_numbers<[1], [0], [0], [1], [0, 0, 1, 1], [], []>} : vector<16x128xf32>, vector<128x128xf32>, vector<16x128xf32> -> vector<16x128xf32>
    %c0_4 = arith.constant 0 : index
    %c0_5 = arith.constant 0 : index
    %79 = vector.load %arg2[%c0_4, %c0_5] : memref<128x2xf32, #tpu.memory_space<vmem>>, vector<128x2xf32>
    %c0_6 = arith.constant 0 : index
    %c0_7 = arith.constant 0 : index
    %80 = vector.load %arg3[%c0_6, %c0_7] : memref<2x128xf32, #tpu.memory_space<vmem>>, vector<2x128xf32>
    %c0_8 = arith.constant 0 : index
    %c0_9 = arith.constant 0 : index
    %81 = vector.load %arg4[%c0_8, %c0_9] : memref<2x128xf32, #tpu.memory_space<vmem>>, vector<2x128xf32>
    %c0_10 = arith.constant 0 : index
    %c0_11 = arith.constant 0 : index
    %82 = vector.load %arg6[%c0_10, %c0_11] : memref<16x16xf32, #tpu.memory_space<vmem>>, vector<16x16xf32>
    %cst_12 = arith.constant dense<0.000000e+00> : vector<16x2xf32>
    %83 = tpu.matmul %78, %79, %cst_12 {dimension_numbers = #tpu.dot_dimension_numbers<[1], [0], [0], [1], [0, 0, 1, 1], [], []>} : vector<16x128xf32>, vector<128x2xf32>, vector<16x2xf32> -> vector<16x2xf32>
    "tpu.trace_start"() <{level = 10 : i32, message = "hf,nf->hn"}> : () -> ()
    %cst_13 = arith.constant dense<0.000000e+00> : vector<2x16xf32>
    %84 = tpu.matmul %80, %78, %cst_13 {dimension_numbers = #tpu.dot_dimension_numbers<[1], [1], [0], [0], [0, 0, 1, 0], [], []>} : vector<2x128xf32>, vector<16x128xf32>, vector<2x16xf32> -> vector<2x16xf32>
    %cst_14 = arith.constant 0.000000e+00 : f32
    "tpu.trace_stop"() : () -> ()
    %85 = vector.broadcast %cst_14 : f32 to vector<16x16xf32>
    %86 = arith.cmpf ogt, %82, %85 : vector<16x16xf32>
    %87 = vector.extract_strided_slice %83 {offsets = [0, 0], sizes = [16, 1], strides = [1, 1]} : vector<16x2xf32> to vector<16x1xf32>
    %88 = vector.extract_strided_slice %84 {offsets = [0, 0], sizes = [1, 16], strides = [1, 1]} : vector<2x16xf32> to vector<1x16xf32>
    %89 = vector.broadcast %87 : vector<16x1xf32> to vector<16x16xf32>
    %90 = vector.broadcast %88 : vector<1x16xf32> to vector<16x16xf32>
    %91 = arith.addf %89, %90 : vector<16x16xf32>
    %cst_15 = arith.constant 2.000000e-01 : f32
    %92 = vector.broadcast %cst_15 : f32 to vector<16x16xf32>
    %93 = arith.mulf %92, %91 : vector<16x16xf32>
    %94 = arith.maximumf %91, %93 : vector<16x16xf32>
    %cst_16 = arith.constant -1.000000e+30 : f32
    %95 = vector.broadcast %cst_16 : f32 to vector<16x16xf32>
    %96 = arith.select %86, %94, %95 : vector<16x16xi1>, vector<16x16xf32>
    %cst_17 = arith.constant dense<0xFF800000> : vector<16xf32>
    %97 = vector.multi_reduction <maximumf>, %96, %cst_17 [1] : vector<16x16xf32> to vector<16xf32>
    %98 = vector.shape_cast %97 : vector<16xf32> to vector<16x1xf32>
    %99 = vector.broadcast %98 : vector<16x1xf32> to vector<16x16xf32>
    %100 = arith.subf %96, %99 : vector<16x16xf32>
    %101 = math.exp %100 : vector<16x16xf32>
    %cst_18 = arith.constant 0.000000e+00 : f32
    %102 = vector.broadcast %cst_18 : f32 to vector<16x16xf32>
    %103 = arith.select %86, %101, %102 : vector<16x16xi1>, vector<16x16xf32>
    %cst_19 = arith.constant dense<0.000000e+00> : vector<16xf32>
    %104 = vector.multi_reduction <add>, %103, %cst_19 [1] : vector<16x16xf32> to vector<16xf32>
    %105 = vector.shape_cast %104 : vector<16xf32> to vector<16x1xf32>
    %cst_20 = arith.constant 9.99999968E-21 : f32
    %106 = vector.broadcast %cst_20 : f32 to vector<16x1xf32>
    %107 = arith.addf %105, %106 : vector<16x1xf32>
    %cst_21 = arith.constant 1.000000e+00 : f32
    %108 = vector.broadcast %cst_21 : f32 to vector<16x1xf32>
    %109 = arith.divf %108, %107 : vector<16x1xf32>
    %110 = vector.broadcast %109 : vector<16x1xf32> to vector<16x16xf32>
    %111 = arith.mulf %103, %110 : vector<16x16xf32>
    %112 = vector.extract_strided_slice %81 {offsets = [0, 0], sizes = [1, 128], strides = [1, 1]} : vector<2x128xf32> to vector<1x128xf32>
    %113 = vector.broadcast %112 : vector<1x128xf32> to vector<16x128xf32>
    %114 = arith.mulf %78, %113 : vector<16x128xf32>
    %cst_22 = arith.constant dense<0.000000e+00> : vector<16x128xf32>
    %115 = tpu.matmul %111, %114, %cst_22 {dimension_numbers = #tpu.dot_dimension_numbers<[1], [0], [0], [1], [0, 0, 1, 1], [], []>} : vector<16x16xf32>, vector<16x128xf32>, vector<16x128xf32> -> vector<16x128xf32>
    %116 = vector.extract_strided_slice %83 {offsets = [0, 1], sizes = [16, 1], strides = [1, 1]} : vector<16x2xf32> to vector<16x1xf32>
    %117 = vector.extract_strided_slice %84 {offsets = [1, 0], sizes = [1, 16], strides = [1, 1]} : vector<2x16xf32> to vector<1x16xf32>
    %118 = vector.broadcast %116 : vector<16x1xf32> to vector<16x16xf32>
    %119 = vector.broadcast %117 : vector<1x16xf32> to vector<16x16xf32>
    %120 = arith.addf %118, %119 : vector<16x16xf32>
    %cst_23 = arith.constant 2.000000e-01 : f32
    %121 = vector.broadcast %cst_23 : f32 to vector<16x16xf32>
    %122 = arith.mulf %121, %120 : vector<16x16xf32>
    %123 = arith.maximumf %120, %122 : vector<16x16xf32>
    %cst_24 = arith.constant -1.000000e+30 : f32
    %124 = vector.broadcast %cst_24 : f32 to vector<16x16xf32>
    %125 = arith.select %86, %123, %124 : vector<16x16xi1>, vector<16x16xf32>
    %cst_25 = arith.constant dense<0xFF800000> : vector<16xf32>
    %126 = vector.multi_reduction <maximumf>, %125, %cst_25 [1] : vector<16x16xf32> to vector<16xf32>
    %127 = vector.shape_cast %126 : vector<16xf32> to vector<16x1xf32>
    %128 = vector.broadcast %127 : vector<16x1xf32> to vector<16x16xf32>
    %129 = arith.subf %125, %128 : vector<16x16xf32>
    %130 = math.exp %129 : vector<16x16xf32>
    %cst_26 = arith.constant 0.000000e+00 : f32
    %131 = vector.broadcast %cst_26 : f32 to vector<16x16xf32>
    %132 = arith.select %86, %130, %131 : vector<16x16xi1>, vector<16x16xf32>
    %cst_27 = arith.constant dense<0.000000e+00> : vector<16xf32>
    %133 = vector.multi_reduction <add>, %132, %cst_27 [1] : vector<16x16xf32> to vector<16xf32>
    %134 = vector.shape_cast %133 : vector<16xf32> to vector<16x1xf32>
    %cst_28 = arith.constant 9.99999968E-21 : f32
    %135 = vector.broadcast %cst_28 : f32 to vector<16x1xf32>
    %136 = arith.addf %134, %135 : vector<16x1xf32>
    %cst_29 = arith.constant 1.000000e+00 : f32
    %137 = vector.broadcast %cst_29 : f32 to vector<16x1xf32>
    %138 = arith.divf %137, %136 : vector<16x1xf32>
    %139 = vector.broadcast %138 : vector<16x1xf32> to vector<16x16xf32>
    %140 = arith.mulf %132, %139 : vector<16x16xf32>
    %141 = vector.extract_strided_slice %81 {offsets = [1, 0], sizes = [1, 128], strides = [1, 1]} : vector<2x128xf32> to vector<1x128xf32>
    %142 = vector.broadcast %141 : vector<1x128xf32> to vector<16x128xf32>
    %143 = arith.mulf %78, %142 : vector<16x128xf32>
    %cst_30 = arith.constant dense<0.000000e+00> : vector<16x128xf32>
    %144 = tpu.matmul %140, %143, %cst_30 {dimension_numbers = #tpu.dot_dimension_numbers<[1], [0], [0], [1], [0, 0, 1, 1], [], []>} : vector<16x16xf32>, vector<16x128xf32>, vector<16x128xf32> -> vector<16x128xf32>
    %145 = arith.addf %115, %144 : vector<16x128xf32>
    %c0_31 = arith.constant 0 : index
    %c0_32 = arith.constant 0 : index
    %146 = vector.load %arg5[%c0_31, %c0_32] : memref<1x128xf32, #tpu.memory_space<vmem>>, vector<1x128xf32>
    %147 = vector.broadcast %146 : vector<1x128xf32> to vector<16x128xf32>
    %148 = arith.addf %145, %147 : vector<16x128xf32>
    %cst_33 = arith.constant 0.000000e+00 : f32
    %149 = vector.broadcast %cst_33 : f32 to vector<16x128xf32>
    %150 = arith.cmpf ogt, %148, %149 : vector<16x128xf32>
    %cst_34 = arith.constant 0.000000e+00 : f32
    %151 = vector.broadcast %cst_34 : f32 to vector<16x128xf32>
    %152 = arith.minimumf %148, %151 : vector<16x128xf32>
    %153 = math.exp %152 : vector<16x128xf32>
    %cst_35 = arith.constant 1.000000e+00 : f32
    %154 = vector.broadcast %cst_35 : f32 to vector<16x128xf32>
    %155 = arith.subf %153, %154 : vector<16x128xf32>
    %156 = arith.select %150, %148, %155 : vector<16x128xi1>, vector<16x128xf32>
    %c0_36 = arith.constant 0 : index
    %c0_37 = arith.constant 0 : index
    %157 = vector.load %arg7[%c0_36, %c0_37] : memref<128x128xf32, #tpu.memory_space<vmem>>, vector<128x128xf32>
    %cst_38 = arith.constant dense<0.000000e+00> : vector<16x128xf32>
    %158 = tpu.matmul %156, %157, %cst_38 {dimension_numbers = #tpu.dot_dimension_numbers<[1], [0], [0], [1], [0, 0, 1, 1], [], []>} : vector<16x128xf32>, vector<128x128xf32>, vector<16x128xf32> -> vector<16x128xf32>
    %c0_39 = arith.constant 0 : index
    %c0_40 = arith.constant 0 : index
    %159 = vector.load %arg8[%c0_39, %c0_40] : memref<128x2xf32, #tpu.memory_space<vmem>>, vector<128x2xf32>
    %c0_41 = arith.constant 0 : index
    %c0_42 = arith.constant 0 : index
    %160 = vector.load %arg9[%c0_41, %c0_42] : memref<2x128xf32, #tpu.memory_space<vmem>>, vector<2x128xf32>
    %c0_43 = arith.constant 0 : index
    %c0_44 = arith.constant 0 : index
    %161 = vector.load %arg10[%c0_43, %c0_44] : memref<2x128xf32, #tpu.memory_space<vmem>>, vector<2x128xf32>
    %c0_45 = arith.constant 0 : index
    %c0_46 = arith.constant 0 : index
    %162 = vector.load %arg12[%c0_45, %c0_46] : memref<8x16xf32, #tpu.memory_space<vmem>>, vector<8x16xf32>
    %cst_47 = arith.constant dense<0.000000e+00> : vector<16x2xf32>
    %163 = tpu.matmul %158, %159, %cst_47 {dimension_numbers = #tpu.dot_dimension_numbers<[1], [0], [0], [1], [0, 0, 1, 1], [], []>} : vector<16x128xf32>, vector<128x2xf32>, vector<16x2xf32> -> vector<16x2xf32>
    "tpu.trace_start"() <{level = 10 : i32, message = "hf,nf->hn"}> : () -> ()
    %cst_48 = arith.constant dense<0.000000e+00> : vector<2x16xf32>
    %164 = tpu.matmul %160, %158, %cst_48 {dimension_numbers = #tpu.dot_dimension_numbers<[1], [1], [0], [0], [0, 0, 1, 0], [], []>} : vector<2x128xf32>, vector<16x128xf32>, vector<2x16xf32> -> vector<2x16xf32>
    %cst_49 = arith.constant 0.000000e+00 : f32
    "tpu.trace_stop"() : () -> ()
    %165 = vector.broadcast %cst_49 : f32 to vector<8x16xf32>
    %166 = arith.cmpf ogt, %162, %165 : vector<8x16xf32>
    %167 = vector.extract_strided_slice %163 {offsets = [0, 0], sizes = [8, 1], strides = [1, 1]} : vector<16x2xf32> to vector<8x1xf32>
    %168 = vector.extract_strided_slice %164 {offsets = [0, 0], sizes = [1, 16], strides = [1, 1]} : vector<2x16xf32> to vector<1x16xf32>
    %169 = vector.broadcast %167 : vector<8x1xf32> to vector<8x16xf32>
    %170 = vector.broadcast %168 : vector<1x16xf32> to vector<8x16xf32>
    %171 = arith.addf %169, %170 : vector<8x16xf32>
    %cst_50 = arith.constant 2.000000e-01 : f32
    %172 = vector.broadcast %cst_50 : f32 to vector<8x16xf32>
    %173 = arith.mulf %172, %171 : vector<8x16xf32>
    %174 = arith.maximumf %171, %173 : vector<8x16xf32>
    %cst_51 = arith.constant -1.000000e+30 : f32
    %175 = vector.broadcast %cst_51 : f32 to vector<8x16xf32>
    %176 = arith.select %166, %174, %175 : vector<8x16xi1>, vector<8x16xf32>
    %cst_52 = arith.constant dense<0xFF800000> : vector<8xf32>
    %177 = vector.multi_reduction <maximumf>, %176, %cst_52 [1] : vector<8x16xf32> to vector<8xf32>
    %178 = vector.shape_cast %177 : vector<8xf32> to vector<8x1xf32>
    %179 = vector.broadcast %178 : vector<8x1xf32> to vector<8x16xf32>
    %180 = arith.subf %176, %179 : vector<8x16xf32>
    %181 = math.exp %180 : vector<8x16xf32>
    %cst_53 = arith.constant 0.000000e+00 : f32
    %182 = vector.broadcast %cst_53 : f32 to vector<8x16xf32>
    %183 = arith.select %166, %181, %182 : vector<8x16xi1>, vector<8x16xf32>
    %cst_54 = arith.constant dense<0.000000e+00> : vector<8xf32>
    %184 = vector.multi_reduction <add>, %183, %cst_54 [1] : vector<8x16xf32> to vector<8xf32>
    %185 = vector.shape_cast %184 : vector<8xf32> to vector<8x1xf32>
    %cst_55 = arith.constant 9.99999968E-21 : f32
    %186 = vector.broadcast %cst_55 : f32 to vector<8x1xf32>
    %187 = arith.addf %185, %186 : vector<8x1xf32>
    %cst_56 = arith.constant 1.000000e+00 : f32
    %188 = vector.broadcast %cst_56 : f32 to vector<8x1xf32>
    %189 = arith.divf %188, %187 : vector<8x1xf32>
    %190 = vector.broadcast %189 : vector<8x1xf32> to vector<8x16xf32>
    %191 = arith.mulf %183, %190 : vector<8x16xf32>
    %192 = vector.extract_strided_slice %161 {offsets = [0, 0], sizes = [1, 128], strides = [1, 1]} : vector<2x128xf32> to vector<1x128xf32>
    %193 = vector.broadcast %192 : vector<1x128xf32> to vector<16x128xf32>
    %194 = arith.mulf %158, %193 : vector<16x128xf32>
    %cst_57 = arith.constant dense<0.000000e+00> : vector<8x128xf32>
    %195 = tpu.matmul %191, %194, %cst_57 {dimension_numbers = #tpu.dot_dimension_numbers<[1], [0], [0], [1], [0, 0, 1, 1], [], []>} : vector<8x16xf32>, vector<16x128xf32>, vector<8x128xf32> -> vector<8x128xf32>
    %196 = vector.extract_strided_slice %163 {offsets = [0, 1], sizes = [8, 1], strides = [1, 1]} : vector<16x2xf32> to vector<8x1xf32>
    %197 = vector.extract_strided_slice %164 {offsets = [1, 0], sizes = [1, 16], strides = [1, 1]} : vector<2x16xf32> to vector<1x16xf32>
    %198 = vector.broadcast %196 : vector<8x1xf32> to vector<8x16xf32>
    %199 = vector.broadcast %197 : vector<1x16xf32> to vector<8x16xf32>
    %200 = arith.addf %198, %199 : vector<8x16xf32>
    %cst_58 = arith.constant 2.000000e-01 : f32
    %201 = vector.broadcast %cst_58 : f32 to vector<8x16xf32>
    %202 = arith.mulf %201, %200 : vector<8x16xf32>
    %203 = arith.maximumf %200, %202 : vector<8x16xf32>
    %cst_59 = arith.constant -1.000000e+30 : f32
    %204 = vector.broadcast %cst_59 : f32 to vector<8x16xf32>
    %205 = arith.select %166, %203, %204 : vector<8x16xi1>, vector<8x16xf32>
    %cst_60 = arith.constant dense<0xFF800000> : vector<8xf32>
    %206 = vector.multi_reduction <maximumf>, %205, %cst_60 [1] : vector<8x16xf32> to vector<8xf32>
    %207 = vector.shape_cast %206 : vector<8xf32> to vector<8x1xf32>
    %208 = vector.broadcast %207 : vector<8x1xf32> to vector<8x16xf32>
    %209 = arith.subf %205, %208 : vector<8x16xf32>
    %210 = math.exp %209 : vector<8x16xf32>
    %cst_61 = arith.constant 0.000000e+00 : f32
    %211 = vector.broadcast %cst_61 : f32 to vector<8x16xf32>
    %212 = arith.select %166, %210, %211 : vector<8x16xi1>, vector<8x16xf32>
    %cst_62 = arith.constant dense<0.000000e+00> : vector<8xf32>
    %213 = vector.multi_reduction <add>, %212, %cst_62 [1] : vector<8x16xf32> to vector<8xf32>
    %214 = vector.shape_cast %213 : vector<8xf32> to vector<8x1xf32>
    %cst_63 = arith.constant 9.99999968E-21 : f32
    %215 = vector.broadcast %cst_63 : f32 to vector<8x1xf32>
    %216 = arith.addf %214, %215 : vector<8x1xf32>
    %cst_64 = arith.constant 1.000000e+00 : f32
    %217 = vector.broadcast %cst_64 : f32 to vector<8x1xf32>
    %218 = arith.divf %217, %216 : vector<8x1xf32>
    %219 = vector.broadcast %218 : vector<8x1xf32> to vector<8x16xf32>
    %220 = arith.mulf %212, %219 : vector<8x16xf32>
    %221 = vector.extract_strided_slice %161 {offsets = [1, 0], sizes = [1, 128], strides = [1, 1]} : vector<2x128xf32> to vector<1x128xf32>
    %222 = vector.broadcast %221 : vector<1x128xf32> to vector<16x128xf32>
    %223 = arith.mulf %158, %222 : vector<16x128xf32>
    %cst_65 = arith.constant dense<0.000000e+00> : vector<8x128xf32>
    %224 = tpu.matmul %220, %223, %cst_65 {dimension_numbers = #tpu.dot_dimension_numbers<[1], [0], [0], [1], [0, 0, 1, 1], [], []>} : vector<8x16xf32>, vector<16x128xf32>, vector<8x128xf32> -> vector<8x128xf32>
    %225 = arith.addf %195, %224 : vector<8x128xf32>
    %c0_66 = arith.constant 0 : index
    %c0_67 = arith.constant 0 : index
    %226 = vector.load %arg11[%c0_66, %c0_67] : memref<1x128xf32, #tpu.memory_space<vmem>>, vector<1x128xf32>
    %227 = vector.broadcast %226 : vector<1x128xf32> to vector<8x128xf32>
    %228 = arith.addf %225, %227 : vector<8x128xf32>
    %c0_68 = arith.constant 0 : index
    %c0_69 = arith.constant 0 : index
    %229 = vector.load %arg13[%c0_68, %c0_69] : memref<128x128xf32, #tpu.memory_space<vmem>>, vector<128x128xf32>
    %cst_70 = arith.constant dense<0.000000e+00> : vector<8x128xf32>
    %230 = tpu.matmul %228, %229, %cst_70 {dimension_numbers = #tpu.dot_dimension_numbers<[1], [0], [0], [1], [0, 0, 1, 1], [], []>} : vector<8x128xf32>, vector<128x128xf32>, vector<8x128xf32> -> vector<8x128xf32>
    %c0_71 = arith.constant 0 : index
    %c0_72 = arith.constant 0 : index
    %231 = vector.load %arg14[%c0_71, %c0_72] : memref<8x128xf32, #tpu.memory_space<vmem>>, vector<8x128xf32>
    tpu.vector_store %arg14[%c0_71, %c0_72], %230 {strides = array<i32>} : memref<8x128xf32, #tpu.memory_space<vmem>>, vector<8x128xf32>,
    return
  }
}

</mosaic_0001>

<llo_original>
// kernel: tpu_custom_call.1
$region0: #{tpu_custom_call.1}
  #allocation0 [shape = 'u32[]', space=smem, size = 0x4, offset = 0x4, fixed_abs, tag = 'smem constant byte address 0x4 - core index']
  #allocation1 [shape = 'u32[72,128]{1,0:T(1,128)}', space=vmem, size = 0x9000, scoped, tag = 'internal scratch']
  %s0 = inlined_call_operand.vmem [shape: s32[24,16,1], index: 0, kind: input, shape index: {}]
  %s1 = inlined_call_operand.vmem [shape: f32[128,128], index: 1, kind: input, shape index: {}]
  %s2 = inlined_call_operand.vmem [shape: f32[128,2], index: 2, kind: input, shape index: {}]
  %s3 = inlined_call_operand.vmem [shape: f32[2,128], index: 3, kind: input, shape index: {}]
  %s4 = inlined_call_operand.vmem [shape: f32[2,128], index: 4, kind: input, shape index: {}]
  %s5 = inlined_call_operand.vmem [shape: f32[1,128], index: 5, kind: input, shape index: {}]
  %s6 = inlined_call_operand.vmem [shape: f32[16,16], index: 6, kind: input, shape index: {}]
  %s7 = inlined_call_operand.vmem [shape: f32[128,128], index: 7, kind: input, shape index: {}]
  %s8 = inlined_call_operand.vmem [shape: f32[128,2], index: 8, kind: input, shape index: {}]
  %s9 = inlined_call_operand.vmem [shape: f32[2,128], index: 9, kind: input, shape index: {}]
  %s10 = inlined_call_operand.vmem [shape: f32[2,128], index: 10, kind: input, shape index: {}]
  %s11 = inlined_call_operand.vmem [shape: f32[1,128], index: 11, kind: input, shape index: {}]
  %s12 = inlined_call_operand.vmem [shape: f32[8,16], index: 12, kind: input, shape index: {}]
  %s13 = inlined_call_operand.vmem [shape: f32[128,128], index: 13, kind: input, shape index: {}]
  %s14 = inlined_call_operand.hbm [shape: f32[8,128], index: 14, kind: output, shape index: {}]
  %s15 = sld [smem:[#allocation0]]
  $region66: #{tpu_custom_call.1} parent=0
    _
  %s17 = ssub.s32 1, %s15
  %s18 = scalar_select 0, %s17, %s15
  $region1: #{tpu_custom_call.1} parent=0
    #allocation2 [shape = 'u8[4096]{0}', space=vmem, size = 0x1000, scoped, tag = 'output window, operand 0, single buffered']
    #allocation3 [shape = 's32[1]{0}', space=sflag, size = 0x4, scoped, tag = 'scoped memory for tpu_custom_call.1']
    %19 = vsyncpa [#allocation3], 0
    // Predicated region
    $region2: #{tpu_custom_call.1} parent=1 // pred_check
      _
    $region3: #{tpu_custom_call.1} parent=1 // pred_check_branch
      %21 = sbr.rel (0) target = $region5
    $region4: #{tpu_custom_call.1} parent=1 // pred_region
      _
    $region5: #{tpu_custom_call.1} parent=1 // pred_fallthru
      _
    // Predicated region
    $region6: #{tpu_custom_call.1} parent=1 // pred_check
      _
    $region7: #{tpu_custom_call.1} parent=1 // pred_check_branch
      %23 = sbr.rel (0) target = $region9
    $region8: #{tpu_custom_call.1} parent=1 // pred_region
      _
    $region9: #{tpu_custom_call.1} parent=1 // pred_fallthru
      _
    // Predicated region
    $region10: #{tpu_custom_call.1} parent=1 // pred_check
      _
    $region11: #{tpu_custom_call.1} parent=1 // pred_check_branch
      %25 = sbr.rel (0) target = $region13
    $region12: #{tpu_custom_call.1} parent=1 // pred_region
      _
    $region13: #{tpu_custom_call.1} parent=1 // pred_fallthru
      _
    // Predicated region
    $region14: #{tpu_custom_call.1} parent=1 // pred_check
      _
    $region15: #{tpu_custom_call.1} parent=1 // pred_check_branch
      %27 = sbr.rel (0) target = $region17
    $region16: #{tpu_custom_call.1} parent=1 // pred_region
      _
    $region17: #{tpu_custom_call.1} parent=1 // pred_fallthru
      _
    // Predicated region
    $region18: #{tpu_custom_call.1} parent=1 // pred_check
      _
    $region19: #{tpu_custom_call.1} parent=1 // pred_check_branch
      %29 = sbr.rel (0) target = $region21
    $region20: #{tpu_custom_call.1} parent=1 // pred_region
      _
    $region21: #{tpu_custom_call.1} parent=1 // pred_fallthru
      _
    // Predicated region
    $region22: #{tpu_custom_call.1} parent=1 // pred_check
      _
    $region23: #{tpu_custom_call.1} parent=1 // pred_check_branch
      %31 = sbr.rel (0) target = $region25
    $region24: #{tpu_custom_call.1} parent=1 // pred_region
      _
    $region25: #{tpu_custom_call.1} parent=1 // pred_fallthru
      _
    // Predicated region
    $region26: #{tpu_custom_call.1} parent=1 // pred_check
      _
    $region27: #{tpu_custom_call.1} parent=1 // pred_check_branch
      %33 = sbr.rel (0) target = $region29
    $region28: #{tpu_custom_call.1} parent=1 // pred_region
      _
    $region29: #{tpu_custom_call.1} parent=1 // pred_fallthru
      _
    // Predicated region
    $region30: #{tpu_custom_call.1} parent=1 // pred_check
      _
    $region31: #{tpu_custom_call.1} parent=1 // pred_check_branch
      %35 = sbr.rel (0) target = $region33
    $region32: #{tpu_custom_call.1} parent=1 // pred_region
      _
    $region33: #{tpu_custom_call.1} parent=1 // pred_fallthru
      _
    // Predicated region
    $region34: #{tpu_custom_call.1} parent=1 // pred_check
      _
    $region35: #{tpu_custom_call.1} parent=1 // pred_check_branch
      %37 = sbr.rel (0) target = $region37
    $region36: #{tpu_custom_call.1} parent=1 // pred_region
      _
    $region37: #{tpu_custom_call.1} parent=1 // pred_fallthru
      _
    // Predicated region
    $region38: #{tpu_custom_call.1} parent=1 // pred_check
      _
    $region39: #{tpu_custom_call.1} parent=1 // pred_check_branch
      %39 = sbr.rel (0) target = $region41
    $region40: #{tpu_custom_call.1} parent=1 // pred_region
      _
    $region41: #{tpu_custom_call.1} parent=1 // pred_fallthru
      _
    // Predicated region
    $region42: #{tpu_custom_call.1} parent=1 // pred_check
      _
    $region43: #{tpu_custom_call.1} parent=1 // pred_check_branch
      %41 = sbr.rel (0) target = $region45
    $region44: #{tpu_custom_call.1} parent=1 // pred_region
      _
    $region45: #{tpu_custom_call.1} parent=1 // pred_fallthru
      _
    // Predicated region
    $region46: #{tpu_custom_call.1} parent=1 // pred_check
      _
    $region47: #{tpu_custom_call.1} parent=1 // pred_check_branch
      %43 = sbr.rel (0) target = $region49
    $region48: #{tpu_custom_call.1} parent=1 // pred_region
      _
    $region49: #{tpu_custom_call.1} parent=1 // pred_fallthru
      _
    // Predicated region
    $region50: #{tpu_custom_call.1} parent=1 // pred_check
      _
    $region51: #{tpu_custom_call.1} parent=1 // pred_check_branch
      %45 = sbr.rel (0) target = $region53
    $region52: #{tpu_custom_call.1} parent=1 // pred_region
      _
    $region53: #{tpu_custom_call.1} parent=1 // pred_fallthru
      _
    // Predicated region
    $region54: #{tpu_custom_call.1} parent=1 // pred_check
      _
    $region55: #{tpu_custom_call.1} parent=1 // pred_check_branch
      %47 = sbr.rel (0) target = $region57
    $region56: #{tpu_custom_call.1} parent=1 // pred_region
      _
    $region57: #{tpu_custom_call.1} parent=1 // pred_fallthru
      _
    %v48 = vld [vmem:[%s0] sm:$0xff]
    %v49 = vld [vmem:[%s0 + $0x8] sm:$0xff]
    %v50 = vld [vmem:[%s0 + $0x10] sm:$0xff]
    %v51 = vld [vmem:[%s0 + $0x18] sm:$0xff]
    %v52 = vld [vmem:[%s0 + $0x20] sm:$0xff]
    %v53 = vld [vmem:[%s0 + $0x28] sm:$0xff]
    %v54 = vld [vmem:[%s0 + $0x30] sm:$0xff]
    %v55 = vld [vmem:[%s0 + $0x38] sm:$0xff]
    %v56 = vld [vmem:[%s0 + $0x40] sm:$0xff]
    %v57 = vld [vmem:[%s0 + $0x48] sm:$0xff]
    %v58 = vld [vmem:[%s0 + $0x50] sm:$0xff]
    %v59 = vld [vmem:[%s0 + $0x58] sm:$0xff]
    %v60 = vld [vmem:[%s0 + $0x60] sm:$0xff]
    %v61 = vld [vmem:[%s0 + $0x68] sm:$0xff]
    %v62 = vld [vmem:[%s0 + $0x70] sm:$0xff]
    %v63 = vld [vmem:[%s0 + $0x78] sm:$0xff]
    %v64 = vld [vmem:[%s0 + $0x80] sm:$0xff]
    %v65 = vld [vmem:[%s0 + $0x88] sm:$0xff]
    %v66 = vld [vmem:[%s0 + $0x90] sm:$0xff]
    %v67 = vld [vmem:[%s0 + $0x98] sm:$0xff]
    %v68 = vld [vmem:[%s0 + $0xa0] sm:$0xff]
    %v69 = vld [vmem:[%s0 + $0xa8] sm:$0xff]
    %v70 = vld [vmem:[%s0 + $0xb0] sm:$0xff]
    %v71 = vld [vmem:[%s0 + $0xb8] sm:$0xff]
    %v72 = vld [vmem:[%s0 + $0xc0] sm:$0xff]
    %v73 = vld [vmem:[%s0 + $0xc8] sm:$0xff]
    %v74 = vld [vmem:[%s0 + $0xd0] sm:$0xff]
    %v75 = vld [vmem:[%s0 + $0xd8] sm:$0xff]
    %v76 = vld [vmem:[%s0 + $0xe0] sm:$0xff]
    %v77 = vld [vmem:[%s0 + $0xe8] sm:$0xff]
    %v78 = vld [vmem:[%s0 + $0xf0] sm:$0xff]
    %v79 = vld [vmem:[%s0 + $0xf8] sm:$0xff]
    %v80 = vld [vmem:[%s0 + $0x100] sm:$0xff]
    %v81 = vld [vmem:[%s0 + $0x108] sm:$0xff]
    %v82 = vld [vmem:[%s0 + $0x110] sm:$0xff]
    %v83 = vld [vmem:[%s0 + $0x118] sm:$0xff]
    %v84 = vld [vmem:[%s0 + $0x120] sm:$0xff]
    %v85 = vld [vmem:[%s0 + $0x128] sm:$0xff]
    %v86 = vld [vmem:[%s0 + $0x130] sm:$0xff]
    %v87 = vld [vmem:[%s0 + $0x138] sm:$0xff]
    %v88 = vld [vmem:[%s0 + $0x140] sm:$0xff]
    %v89 = vld [vmem:[%s0 + $0x148] sm:$0xff]
    %v90 = vld [vmem:[%s0 + $0x150] sm:$0xff]
    %v91 = vld [vmem:[%s0 + $0x158] sm:$0xff]
    %v92 = vld [vmem:[%s0 + $0x160] sm:$0xff]
    %v93 = vld [vmem:[%s0 + $0x168] sm:$0xff]
    %v94 = vld [vmem:[%s0 + $0x170] sm:$0xff]
    %v95 = vld [vmem:[%s0 + $0x178] sm:$0xff]
    %v96 = vlaneseq
    %v97 = vand.u32 %v96, 127
    %98 = vset.pattern.permute.xlu0 0
    %99 = vperm.xlu0 %98, %v48
    %v100 = vpop.permute.xlu0 %99
    %101 = vset.pattern.permute.xlu0 0
    %102 = vperm.xlu0 %101, %v49
    %v103 = vpop.permute.xlu0 %102
    %104 = vset.pattern.permute.xlu0 0
    %105 = vperm.xlu0 %104, %v50
    %v106 = vpop.permute.xlu0 %105
    %107 = vset.pattern.permute.xlu0 0
    %108 = vperm.xlu0 %107, %v51
    %v109 = vpop.permute.xlu0 %108
    %110 = vset.pattern.permute.xlu0 0
    %111 = vperm.xlu0 %110, %v52
    %v112 = vpop.permute.xlu0 %111
    %113 = vset.pattern.permute.xlu0 0
    %114 = vperm.xlu0 %113, %v53
    %v115 = vpop.permute.xlu0 %114
    %116 = vset.pattern.permute.xlu0 0
    %117 = vperm.xlu0 %116, %v54
    %v118 = vpop.permute.xlu0 %117
    %119 = vset.pattern.permute.xlu0 0
    %120 = vperm.xlu0 %119, %v55
    %v121 = vpop.permute.xlu0 %120
    %122 = vset.pattern.permute.xlu0 0
    %123 = vperm.xlu0 %122, %v56
    %v124 = vpop.permute.xlu0 %123
    %125 = vset.pattern.permute.xlu0 0
    %126 = vperm.xlu0 %125, %v57
    %v127 = vpop.permute.xlu0 %126
    %128 = vset.pattern.permute.xlu0 0
    %129 = vperm.xlu0 %128, %v58
    %v130 = vpop.permute.xlu0 %129
    %131 = vset.pattern.permute.xlu0 0
    %132 = vperm.xlu0 %131, %v59
    %v133 = vpop.permute.xlu0 %132
    %134 = vset.pattern.permute.xlu0 0
    %135 = vperm.xlu0 %134, %v60
    %v136 = vpop.permute.xlu0 %135
    %137 = vset.pattern.permute.xlu0 0
    %138 = vperm.xlu0 %137, %v61
    %v139 = vpop.permute.xlu0 %138
    %140 = vset.pattern.permute.xlu0 0
    %141 = vperm.xlu0 %140, %v62
    %v142 = vpop.permute.xlu0 %141
    %143 = vset.pattern.permute.xlu0 0
    %144 = vperm.xlu0 %143, %v63
    %v145 = vpop.permute.xlu0 %144
    %146 = vset.pattern.permute.xlu0 0
    %147 = vperm.xlu0 %146, %v64
    %v148 = vpop.permute.xlu0 %147
    %149 = vset.pattern.permute.xlu0 0
    %150 = vperm.xlu0 %149, %v65
    %v151 = vpop.permute.xlu0 %150
    %152 = vset.pattern.permute.xlu0 0
    %153 = vperm.xlu0 %152, %v66
    %v154 = vpop.permute.xlu0 %153
    %155 = vset.pattern.permute.xlu0 0
    %156 = vperm.xlu0 %155, %v67
    %v157 = vpop.permute.xlu0 %156
    %158 = vset.pattern.permute.xlu0 0
    %159 = vperm.xlu0 %158, %v68
    %v160 = vpop.permute.xlu0 %159
    %161 = vset.pattern.permute.xlu0 0
    %162 = vperm.xlu0 %161, %v69
    %v163 = vpop.permute.xlu0 %162
    %164 = vset.pattern.permute.xlu0 0
    %165 = vperm.xlu0 %164, %v70
    %v166 = vpop.permute.xlu0 %165
    %167 = vset.pattern.permute.xlu0 0
    %168 = vperm.xlu0 %167, %v71
    %v169 = vpop.permute.xlu0 %168
    %170 = vset.pattern.permute.xlu0 0
    %171 = vperm.xlu0 %170, %v72
    %v172 = vpop.permute.xlu0 %171
    %173 = vset.pattern.permute.xlu0 0
    %174 = vperm.xlu0 %173, %v73
    %v175 = vpop.permute.xlu0 %174
    %176 = vset.pattern.permute.xlu0 0
    %177 = vperm.xlu0 %176, %v74
    %v178 = vpop.permute.xlu0 %177
    %179 = vset.pattern.permute.xlu0 0
    %180 = vperm.xlu0 %179, %v75
    %v181 = vpop.permute.xlu0 %180
    %182 = vset.pattern.permute.xlu0 0
    %183 = vperm.xlu0 %182, %v76
    %v184 = vpop.permute.xlu0 %183
    %185 = vset.pattern.permute.xlu0 0
    %186 = vperm.xlu0 %185, %v77
    %v187 = vpop.permute.xlu0 %186
    %188 = vset.pattern.permute.xlu0 0
    %189 = vperm.xlu0 %188, %v78
    %v190 = vpop.permute.xlu0 %189
    %191 = vset.pattern.permute.xlu0 0
    %192 = vperm.xlu0 %191, %v79
    %v193 = vpop.permute.xlu0 %192
    %194 = vset.pattern.permute.xlu0 0
    %195 = vperm.xlu0 %194, %v80
    %v196 = vpop.permute.xlu0 %195
    %197 = vset.pattern.permute.xlu0 0
    %198 = vperm.xlu0 %197, %v81
    %v199 = vpop.permute.xlu0 %198
    %200 = vset.pattern.permute.xlu0 0
    %201 = vperm.xlu0 %200, %v82
    %v202 = vpop.permute.xlu0 %201
    %203 = vset.pattern.permute.xlu0 0
    %204 = vperm.xlu0 %203, %v83
    %v205 = vpop.permute.xlu0 %204
    %206 = vset.pattern.permute.xlu0 0
    %207 = vperm.xlu0 %206, %v84
    %v208 = vpop.permute.xlu0 %207
    %209 = vset.pattern.permute.xlu0 0
    %210 = vperm.xlu0 %209, %v85
    %v211 = vpop.permute.xlu0 %210
    %212 = vset.pattern.permute.xlu0 0
    %213 = vperm.xlu0 %212, %v86
    %v214 = vpop.permute.xlu0 %213
    %215 = vset.pattern.permute.xlu0 0
    %216 = vperm.xlu0 %215, %v87
    %v217 = vpop.permute.xlu0 %216
    %218 = vset.pattern.permute.xlu0 0
    %219 = vperm.xlu0 %218, %v88
    %v220 = vpop.permute.xlu0 %219
    %221 = vset.pattern.permute.xlu0 0
    %222 = vperm.xlu0 %221, %v89
    %v223 = vpop.permute.xlu0 %222
    %224 = vset.pattern.permute.xlu0 0
    %225 = vperm.xlu0 %224, %v90
    %v226 = vpop.permute.xlu0 %225
    %227 = vset.pattern.permute.xlu0 0
    %228 = vperm.xlu0 %227, %v91
    %v229 = vpop.permute.xlu0 %228
    %230 = vset.pattern.permute.xlu0 0
    %231 = vperm.xlu0 %230, %v92
    %v232 = vpop.permute.xlu0 %231
    %233 = vset.pattern.permute.xlu0 0
    %234 = vperm.xlu0 %233, %v93
    %v235 = vpop.permute.xlu0 %234
    %236 = vset.pattern.permute.xlu0 0
    %237 = vperm.xlu0 %236, %v94
    %v238 = vpop.permute.xlu0 %237
    %239 = vset.pattern.permute.xlu0 0
    %240 = vperm.xlu0 %239, %v95
    %v241 = vpop.permute.xlu0 %240
    %vm242 = vcmp.eq.s32.totalorder %v100, %v97
    %vm243 = vcmp.eq.s32.totalorder %v103, %v97
    %vm244 = vcmp.eq.s32.totalorder %v106, %v97
    %vm245 = vcmp.eq.s32.totalorder %v109, %v97
    %vm246 = vcmp.eq.s32.totalorder %v112, %v97
    %vm247 = vcmp.eq.s32.totalorder %v115, %v97
    %vm248 = vcmp.eq.s32.totalorder %v118, %v97
    %vm249 = vcmp.eq.s32.totalorder %v121, %v97
    %vm250 = vcmp.eq.s32.totalorder %v124, %v97
    %vm251 = vcmp.eq.s32.totalorder %v127, %v97
    %vm252 = vcmp.eq.s32.totalorder %v130, %v97
    %vm253 = vcmp.eq.s32.totalorder %v133, %v97
    %vm254 = vcmp.eq.s32.totalorder %v136, %v97
    %vm255 = vcmp.eq.s32.totalorder %v139, %v97
    %vm256 = vcmp.eq.s32.totalorder %v142, %v97
    %vm257 = vcmp.eq.s32.totalorder %v145, %v97
    %vm258 = vcmp.eq.s32.totalorder %v148, %v97
    %vm259 = vcmp.eq.s32.totalorder %v151, %v97
    %vm260 = vcmp.eq.s32.totalorder %v154, %v97
    %vm261 = vcmp.eq.s32.totalorder %v157, %v97
    %vm262 = vcmp.eq.s32.totalorder %v160, %v97
    %vm263 = vcmp.eq.s32.totalorder %v163, %v97
    %vm264 = vcmp.eq.s32.totalorder %v166, %v97
    %vm265 = vcmp.eq.s32.totalorder %v169, %v97
    %vm266 = vcmp.eq.s32.totalorder %v172, %v97
    %vm267 = vcmp.eq.s32.totalorder %v175, %v97
    %vm268 = vcmp.eq.s32.totalorder %v178, %v97
    %vm269 = vcmp.eq.s32.totalorder %v181, %v97
    %vm270 = vcmp.eq.s32.totalorder %v184, %v97
    %vm271 = vcmp.eq.s32.totalorder %v187, %v97
    %vm272 = vcmp.eq.s32.totalorder %v190, %v97
    %vm273 = vcmp.eq.s32.totalorder %v193, %v97
    %vm274 = vcmp.eq.s32.totalorder %v196, %v97
    %vm275 = vcmp.eq.s32.totalorder %v199, %v97
    %vm276 = vcmp.eq.s32.totalorder %v202, %v97
    %vm277 = vcmp.eq.s32.totalorder %v205, %v97
    %vm278 = vcmp.eq.s32.totalorder %v208, %v97
    %vm279 = vcmp.eq.s32.totalorder %v211, %v97
    %vm280 = vcmp.eq.s32.totalorder %v214, %v97
    %vm281 = vcmp.eq.s32.totalorder %v217, %v97
    %vm282 = vcmp.eq.s32.totalorder %v220, %v97
    %vm283 = vcmp.eq.s32.totalorder %v223, %v97
    %vm284 = vcmp.eq.s32.totalorder %v226, %v97
    %vm285 = vcmp.eq.s32.totalorder %v229, %v97
    %vm286 = vcmp.eq.s32.totalorder %v232, %v97
    %vm287 = vcmp.eq.s32.totalorder %v235, %v97
    %vm288 = vcmp.eq.s32.totalorder %v238, %v97
    %vm289 = vcmp.eq.s32.totalorder %v241, %v97
    %v290 = vsel %vm242, 1, 0
    %v291 = vsel %vm243, 1, 0
    %v292 = vsel %vm244, 1, 0
    %v293 = vsel %vm245, 1, 0
    %v294 = vsel %vm246, 1, 0
    %v295 = vsel %vm247, 1, 0
    %v296 = vsel %vm248, 1, 0
    %v297 = vsel %vm249, 1, 0
    %v298 = vsel %vm250, 1, 0
    %v299 = vsel %vm251, 1, 0
    %v300 = vsel %vm252, 1, 0
    %v301 = vsel %vm253, 1, 0
    %v302 = vsel %vm254, 1, 0
    %v303 = vsel %vm255, 1, 0
    %v304 = vsel %vm256, 1, 0
    %v305 = vsel %vm257, 1, 0
    %v306 = vsel %vm258, 1, 0
    %v307 = vsel %vm259, 1, 0
    %v308 = vsel %vm260, 1, 0
    %v309 = vsel %vm261, 1, 0
    %v310 = vsel %vm262, 1, 0
    %v311 = vsel %vm263, 1, 0
    %v312 = vsel %vm264, 1, 0
    %v313 = vsel %vm265, 1, 0
    %v314 = vsel %vm266, 1, 0
    %v315 = vsel %vm267, 1, 0
    %v316 = vsel %vm268, 1, 0
    %v317 = vsel %vm269, 1, 0
    %v318 = vsel %vm270, 1, 0
    %v319 = vsel %vm271, 1, 0
    %v320 = vsel %vm272, 1, 0
    %v321 = vsel %vm273, 1, 0
    %v322 = vsel %vm274, 1, 0
    %v323 = vsel %vm275, 1, 0
    %v324 = vsel %vm276, 1, 0
    %v325 = vsel %vm277, 1, 0
    %v326 = vsel %vm278, 1, 0
    %v327 = vsel %vm279, 1, 0
    %v328 = vsel %vm280, 1, 0
    %v329 = vsel %vm281, 1, 0
    %v330 = vsel %vm282, 1, 0
    %v331 = vsel %vm283, 1, 0
    %v332 = vsel %vm284, 1, 0
    %v333 = vsel %vm285, 1, 0
    %v334 = vsel %vm286, 1, 0
    %v335 = vsel %vm287, 1, 0
    %v336 = vsel %vm288, 1, 0
    %v337 = vsel %vm289, 1, 0
    %v338 = vcvt.s32.f32 %v290
    %v339 = vcvt.s32.f32 %v291
    %v340 = vcvt.s32.f32 %v292
    %v341 = vcvt.s32.f32 %v293
    %v342 = vcvt.s32.f32 %v294
    %v343 = vcvt.s32.f32 %v295
    %v344 = vcvt.s32.f32 %v296
    %v345 = vcvt.s32.f32 %v297
    %v346 = vcvt.s32.f32 %v298
    %v347 = vcvt.s32.f32 %v299
    %v348 = vcvt.s32.f32 %v300
    %v349 = vcvt.s32.f32 %v301
    %v350 = vcvt.s32.f32 %v302
    %v351 = vcvt.s32.f32 %v303
    %v352 = vcvt.s32.f32 %v304
    %v353 = vcvt.s32.f32 %v305
    %v354 = vcvt.s32.f32 %v306
    %v355 = vcvt.s32.f32 %v307
    %v356 = vcvt.s32.f32 %v308
    %v357 = vcvt.s32.f32 %v309
    %v358 = vcvt.s32.f32 %v310
    %v359 = vcvt.s32.f32 %v311
    %v360 = vcvt.s32.f32 %v312
    %v361 = vcvt.s32.f32 %v313
    %v362 = vcvt.s32.f32 %v314
    %v363 = vcvt.s32.f32 %v315
    %v364 = vcvt.s32.f32 %v316
    %v365 = vcvt.s32.f32 %v317
    %v366 = vcvt.s32.f32 %v318
    %v367 = vcvt.s32.f32 %v319
    %v368 = vcvt.s32.f32 %v320
    %v369 = vcvt.s32.f32 %v321
    %v370 = vcvt.s32.f32 %v322
    %v371 = vcvt.s32.f32 %v323
    %v372 = vcvt.s32.f32 %v324
    %v373 = vcvt.s32.f32 %v325
    %v374 = vcvt.s32.f32 %v326
    %v375 = vcvt.s32.f32 %v327
    %v376 = vcvt.s32.f32 %v328
    %v377 = vcvt.s32.f32 %v329
    %v378 = vcvt.s32.f32 %v330
    %v379 = vcvt.s32.f32 %v331
    %v380 = vcvt.s32.f32 %v332
    %v381 = vcvt.s32.f32 %v333
    %v382 = vcvt.s32.f32 %v334
    %v383 = vcvt.s32.f32 %v335
    %v384 = vcvt.s32.f32 %v336
    %v385 = vcvt.s32.f32 %v337
    %v386 = vadd.f32 %v338, %v340
    %v387 = vadd.f32 %v339, %v341
    %v388 = vadd.f32 %v386, %v342
    %v389 = vadd.f32 %v387, %v343
    %v390 = vadd.f32 %v388, %v344
    %v391 = vadd.f32 %v389, %v345
    %v392 = vadd.f32 %v390, %v346
    %v393 = vadd.f32 %v391, %v347
    %v394 = vadd.f32 %v392, %v348
    %v395 = vadd.f32 %v393, %v349
    %v396 = vadd.f32 %v394, %v350
    %v397 = vadd.f32 %v395, %v351
    %v398 = vadd.f32 %v396, %v352
    %v399 = vadd.f32 %v397, %v353
    %v400 = vadd.f32 %v398, %v354
    %v401 = vadd.f32 %v399, %v355
    %v402 = vadd.f32 %v400, %v356
    %v403 = vadd.f32 %v401, %v357
    %v404 = vadd.f32 %v402, %v358
    %v405 = vadd.f32 %v403, %v359
    %v406 = vadd.f32 %v404, %v360
    %v407 = vadd.f32 %v405, %v361
    %v408 = vadd.f32 %v406, %v362
    %v409 = vadd.f32 %v407, %v363
    %v410 = vadd.f32 %v408, %v364
    %v411 = vadd.f32 %v409, %v365
    %v412 = vadd.f32 %v410, %v366
    %v413 = vadd.f32 %v411, %v367
    %v414 = vadd.f32 %v412, %v368
    %v415 = vadd.f32 %v413, %v369
    %v416 = vadd.f32 %v414, %v370
    %v417 = vadd.f32 %v415, %v371
    %v418 = vadd.f32 %v416, %v372
    %v419 = vadd.f32 %v417, %v373
    %v420 = vadd.f32 %v418, %v374
    %v421 = vadd.f32 %v419, %v375
    %v422 = vadd.f32 %v420, %v376
    %v423 = vadd.f32 %v421, %v377
    %v424 = vadd.f32 %v422, %v378
    %v425 = vadd.f32 %v423, %v379
    %v426 = vadd.f32 %v424, %v380
    %v427 = vadd.f32 %v425, %v381
    %v428 = vadd.f32 %v426, %v382
    %v429 = vadd.f32 %v427, %v383
    %v430 = vadd.f32 %v428, %v384
    %v431 = vadd.f32 %v429, %v385
    %v432 = vld [vmem:[%s1] sm:$0xff]
    %v433 = vld [vmem:[%s1 + $0x8] sm:$0xff]
    %v434 = vld [vmem:[%s1 + $0x10] sm:$0xff]
    %v435 = vld [vmem:[%s1 + $0x18] sm:$0xff]
    %v436 = vld [vmem:[%s1 + $0x20] sm:$0xff]
    %v437 = vld [vmem:[%s1 + $0x28] sm:$0xff]
    %v438 = vld [vmem:[%s1 + $0x30] sm:$0xff]
    %v439 = vld [vmem:[%s1 + $0x38] sm:$0xff]
    %v440 = vld [vmem:[%s1 + $0x40] sm:$0xff]
    %v441 = vld [vmem:[%s1 + $0x48] sm:$0xff]
    %v442 = vld [vmem:[%s1 + $0x50] sm:$0xff]
    %v443 = vld [vmem:[%s1 + $0x58] sm:$0xff]
    %v444 = vld [vmem:[%s1 + $0x60] sm:$0xff]
    %v445 = vld [vmem:[%s1 + $0x68] sm:$0xff]
    %v446 = vld [vmem:[%s1 + $0x70] sm:$0xff]
    %v447 = vld [vmem:[%s1 + $0x78] sm:$0xff]
    %448 = vmatpush.msra.mxu0 %v447
    %449 = vmatpush.msra.mxu0 %v446
    %450 = vmatpush.msra.mxu0 %v445
    %451 = vmatpush.msra.mxu0 %v444
    %452 = vmatpush.msra.mxu0 %v443
    %453 = vmatpush.msra.mxu0 %v442
    %454 = vmatpush.msra.mxu0 %v441
    %455 = vmatpush.msra.mxu0 %v440
    %456 = vmatpush.msra.mxu0 %v439
    %457 = vmatpush.msra.mxu0 %v438
    %458 = vmatpush.msra.mxu0 %v437
    %459 = vmatpush.msra.mxu0 %v436
    %460 = vmatpush.msra.mxu0 %v435
    %461 = vmatpush.msra.mxu0 %v434
    %462 = vmatpush.msra.mxu0 %v433
    %463 = vmatpush.msra.mxu0 %v432
    %464 = vmatmul.f32.gmra.mxu0 %v430
    %v465 = vpop.f32.mrf.mxu0
    %v466 = vadd.f32 0.0, %v465
    %467 = vmatmul.f32.gmra.mxu0 %v431
    %v468 = vpop.f32.mrf.mxu0
    %v469 = vadd.f32 0.0, %v468
    %470 = vdwg.mxu0
    %v471 = vld [vmem:[%s2] sm:$0xff]
    %v472 = vld [vmem:[%s2 + $0x8] sm:$0xff]
    %v473 = vld [vmem:[%s2 + $0x10] sm:$0xff]
    %v474 = vld [vmem:[%s2 + $0x18] sm:$0xff]
    %v475 = vld [vmem:[%s2 + $0x20] sm:$0xff]
    %v476 = vld [vmem:[%s2 + $0x28] sm:$0xff]
    %v477 = vld [vmem:[%s2 + $0x30] sm:$0xff]
    %v478 = vld [vmem:[%s2 + $0x38] sm:$0xff]
    %v479 = vld [vmem:[%s2 + $0x40] sm:$0xff]
    %v480 = vld [vmem:[%s2 + $0x48] sm:$0xff]
    %v481 = vld [vmem:[%s2 + $0x50] sm:$0xff]
    %v482 = vld [vmem:[%s2 + $0x58] sm:$0xff]
    %v483 = vld [vmem:[%s2 + $0x60] sm:$0xff]
    %v484 = vld [vmem:[%s2 + $0x68] sm:$0xff]
    %v485 = vld [vmem:[%s2 + $0x70] sm:$0xff]
    %v486 = vld [vmem:[%s2 + $0x78] sm:$0xff]
    %v487 = vld [vmem:[%s3] sm:$0x3]
    %v488 = vld [vmem:[%s4] sm:$0x3]
    %v489 = vld [vmem:[%s6] sm:$0xff]
    %v490 = vld [vmem:[%s6 + $0x8] sm:$0xff]
    %491 = vmatpush.msra.mxu0 %v486
    %492 = vmatpush.msra.mxu0 %v485
    %493 = vmatpush.msra.mxu0 %v484
    %494 = vmatpush.msra.mxu0 %v483
    %495 = vmatpush.msra.mxu0 %v482
    %496 = vmatpush.msra.mxu0 %v481
    %497 = vmatpush.msra.mxu0 %v480
    %498 = vmatpush.msra.mxu0 %v479
    %499 = vmatpush.msra.mxu0 %v478
    %500 = vmatpush.msra.mxu0 %v477
    %501 = vmatpush.msra.mxu0 %v476
    %502 = vmatpush.msra.mxu0 %v475
    %503 = vmatpush.msra.mxu0 %v474
    %504 = vmatpush.msra.mxu0 %v473
    %505 = vmatpush.msra.mxu0 %v472
    %506 = vmatpush.msra.mxu0 %v471
    %507 = vmatmul.f32.gmra.mxu0 %v466
    %v508 = vpop.f32.mrf.mxu0
    %v509 = vadd.f32 0.0, %v508
    %510 = vmatmul.f32.gmra.mxu0 %v469
    %v511 = vpop.f32.mrf.mxu0
    %v512 = vadd.f32 0.0, %v511
    %513 = vdwg.mxu0
    %514 = vmatpush.xpose.msra.mxu0 0.0
    %515 = vmatpush.xpose.msra.mxu0 0.0
    %516 = vmatpush.xpose.msra.mxu0 0.0
    %517 = vmatpush.xpose.msra.mxu0 0.0
    %518 = vmatpush.xpose.msra.mxu0 0.0
    %519 = vmatpush.xpose.msra.mxu0 0.0
    %520 = vmatpush.xpose.msra.mxu0 0.0
    %521 = vmatpush.xpose.msra.mxu0 0.0
    %522 = vmatpush.xpose.msra.mxu0 0.0
    %523 = vmatpush.xpose.msra.mxu0 0.0
    %524 = vmatpush.xpose.msra.mxu0 0.0
    %525 = vmatpush.xpose.msra.mxu0 0.0
    %526 = vmatpush.xpose.msra.mxu0 0.0
    %527 = vmatpush.xpose.msra.mxu0 0.0
    %528 = vmatpush.xpose.msra.mxu0 %v469
    %529 = vmatpush.xpose.msra.mxu0 %v466
    %530 = vmatmul.f32.gmra.mxu0 %v487
    %v531 = vpop.f32.mrf.mxu0
    %v532 = vadd.f32 0.0, %v531
    %533 = vdwg.mxu0
    %vm534 = vcmp.gt.f32.partialorder %v489, 0.0
    %vm535 = vcmp.gt.f32.partialorder %v490, 0.0
    %537 = vset.pattern.permute.xlu0 0
    %538 = vperm.xlu0 %537, %v509
    %v539 = vpop.permute.xlu0 %538
    %542 = vset.pattern.permute.xlu0 0
    %543 = vperm.xlu0 %542, %v512
    %v544 = vpop.permute.xlu0 %543
    %v546 = vperm.slane %v532, 0
    %v547 = vadd.f32 %v539, %v546
    %v548 = vadd.f32 %v544, %v546
    %v549 = vmul.f32 %v547, 0.2
    %v550 = vmul.f32 %v548, 0.2
    %v551 = vmax.f32 %v547, %v549
    %v552 = vmax.f32 %v548, %v550
    %v553 = vsel %vm534, %v551, -1e+30
    %v554 = vsel %vm535, %v552, -1e+30
    %vm555 = vcmask 130048
    %v556 = vsel %vm555, %v553, -inf
    %557 = vmax.xlane.f32.xlu0 %v556
    %v558 = vpop.xlane.xlu0 %557
    %v559 = vsel %vm555, %v554, -inf
    %560 = vmax.xlane.f32.xlu0 %v559
    %v561 = vpop.xlane.xlu0 %560
    %v562 = vsub.f32 %v553, %v558
    %v563 = vsub.f32 %v554, %v561
    %v564 = vmul.f32 %v562, 1.442695
    %v565 = vpow.pop %v564
    %v566 = vmul.f32 %v563, 1.442695
    %v567 = vpow.pop %v566
    %v568 = vsel %vm534, %v565, 0.0
    %v569 = vsel %vm535, %v567, 0.0
    %v570 = vsel %vm555, %v568, 0.0
    %571 = vadd.xlane.f32.xlu0 %v570
    %v572 = vpop.xlane.xlu0 %571
    %v573 = vsel %vm555, %v569, 0.0
    %574 = vadd.xlane.f32.xlu0 %v573
    %v575 = vpop.xlane.xlu0 %574
    %v576 = vadd.f32 %v572, 1e-20
    %v577 = vadd.f32 %v575, 1e-20
    %v578 = vrcp.pop %v576
    %v579 = vmul.f32 %v576, %v578
    %v580 = vsub.f32 1.0, %v579
    %v581 = vmul.f32 %v578, %v580
    %v582 = vadd.f32 %v578, %v581
    %vm583 = vweird.f32 %v576
    %vm584 = vweird.f32 %v578
    %vm585 = vmor %vm583, %vm584
    %v586 = vsel %vm585, %v578, %v582
    %v587 = vand.u32 2147483647, %v576
    %vm588 = vcmp.eq.f32.partialorder %v587, 8.507059e+37
    %v589 = vand.u32 %v576, 2147483648
    %v590 = vor.u32 1.1754944e-38, %v589
    %v591 = vsel %vm588, %v590, %v586
    %v592 = vmul.f32 1.0, %v591
    %v593 = vrcp.pop %v577
    %v594 = vmul.f32 %v577, %v593
    %v595 = vsub.f32 1.0, %v594
    %v596 = vmul.f32 %v593, %v595
    %v597 = vadd.f32 %v593, %v596
    %vm598 = vweird.f32 %v577
    %vm599 = vweird.f32 %v593
    %vm600 = vmor %vm598, %vm599
    %v601 = vsel %vm600, %v593, %v597
    %v602 = vand.u32 2147483647, %v577
    %vm603 = vcmp.eq.f32.partialorder %v602, 8.507059e+37
    %v604 = vand.u32 %v577, 2147483648
    %v605 = vor.u32 1.1754944e-38, %v604
    %v606 = vsel %vm603, %v605, %v601
    %v607 = vmul.f32 1.0, %v606
    %v608 = vmul.f32 %v568, %v592
    %v609 = vmul.f32 %v569, %v607
    %v610 = vperm.slane %v488, 0
    %v611 = vmul.f32 %v466, %v610
    %v612 = vmul.f32 %v469, %v610
    %613 = vset.pattern.permute.xlu0 1
    %614 = vperm.xlu0 %613, %v509
    %v615 = vpop.permute.xlu0 %614
    %617 = vset.pattern.permute.xlu0 1
    %618 = vperm.xlu0 %617, %v512
    %v619 = vpop.permute.xlu0 %618
    %v621 = vperm.slane %v532, 1
    %v622 = vadd.f32 %v615, %v621
    %v623 = vadd.f32 %v619, %v621
    %v624 = vmul.f32 %v622, 0.2
    %v625 = vmul.f32 %v623, 0.2
    %v626 = vmax.f32 %v622, %v624
    %v627 = vmax.f32 %v623, %v625
    %v628 = vsel %vm534, %v626, -1e+30
    %v629 = vsel %vm535, %v627, -1e+30
    %v630 = vsel %vm555, %v628, -inf
    %631 = vmax.xlane.f32.xlu0 %v630
    %v632 = vpop.xlane.xlu0 %631
    %v633 = vsel %vm555, %v629, -inf
    %634 = vmax.xlane.f32.xlu0 %v633
    %v635 = vpop.xlane.xlu0 %634
    %v636 = vsub.f32 %v628, %v632
    %v637 = vsub.f32 %v629, %v635
    %v638 = vmul.f32 %v636, 1.442695
    %v639 = vpow.pop %v638
    %v640 = vmul.f32 %v637, 1.442695
    %v641 = vpow.pop %v640
    %v642 = vsel %vm534, %v639, 0.0
    %v643 = vsel %vm535, %v641, 0.0
    %v644 = vsel %vm555, %v642, 0.0
    %645 = vadd.xlane.f32.xlu0 %v644
    %v646 = vpop.xlane.xlu0 %645
    %v647 = vsel %vm555, %v643, 0.0
    %648 = vadd.xlane.f32.xlu0 %v647
    %v649 = vpop.xlane.xlu0 %648
    %v650 = vadd.f32 %v646, 1e-20
    %v651 = vadd.f32 %v649, 1e-20
    %v652 = vrcp.pop %v650
    %v653 = vmul.f32 %v650, %v652
    %v654 = vsub.f32 1.0, %v653
    %v655 = vmul.f32 %v652, %v654
    %v656 = vadd.f32 %v652, %v655
    %vm657 = vweird.f32 %v650
    %vm658 = vweird.f32 %v652
    %vm659 = vmor %vm657, %vm658
    %v660 = vsel %vm659, %v652, %v656
    %v661 = vand.u32 2147483647, %v650
    %vm662 = vcmp.eq.f32.partialorder %v661, 8.507059e+37
    %v663 = vand.u32 %v650, 2147483648
    %v664 = vor.u32 1.1754944e-38, %v663
    %v665 = vsel %vm662, %v664, %v660
    %v666 = vmul.f32 1.0, %v665
    %v667 = vrcp.pop %v651
    %v668 = vmul.f32 %v651, %v667
    %v669 = vsub.f32 1.0, %v668
    %v670 = vmul.f32 %v667, %v669
    %v671 = vadd.f32 %v667, %v670
    %vm672 = vweird.f32 %v651
    %vm673 = vweird.f32 %v667
    %vm674 = vmor %vm672, %vm673
    %v675 = vsel %vm674, %v667, %v671
    %v676 = vand.u32 2147483647, %v651
    %vm677 = vcmp.eq.f32.partialorder %v676, 8.507059e+37
    %v678 = vand.u32 %v651, 2147483648
    %v679 = vor.u32 1.1754944e-38, %v678
    %v680 = vsel %vm677, %v679, %v675
    %v681 = vmul.f32 1.0, %v680
    %v682 = vmul.f32 %v642, %v666
    %v683 = vmul.f32 %v643, %v681
    %v684 = vperm.slane %v488, 1
    %v685 = vmul.f32 %v466, %v684
    %v686 = vmul.f32 %v469, %v684
    %v688 = vsel %vm555, %v682, 0
    %v691 = vsel %vm555, %v683, 0
    %693 = vmatpush.msra.mxu0 0.0
    %694 = vmatpush.msra.mxu0 0.0
    %695 = vmatpush.msra.mxu0 0.0
    %696 = vmatpush.msra.mxu0 0.0
    %697 = vmatpush.msra.mxu0 0.0
    %698 = vmatpush.msra.mxu0 0.0
    %699 = vmatpush.msra.mxu0 0.0
    %700 = vmatpush.msra.mxu0 0.0
    %701 = vmatpush.msra.mxu0 0.0
    %702 = vmatpush.msra.mxu0 0.0
    %703 = vmatpush.msra.mxu0 0.0
    %704 = vmatpush.msra.mxu0 0.0
    %705 = vmatpush.msra.mxu0 0.0
    %706 = vmatpush.msra.mxu0 0.0
    %707 = vmatpush.msra.mxu0 %v686
    %708 = vmatpush.msra.mxu0 %v685
    %709 = vmatmul.f32.gmra.mxu0 %v688
    %v710 = vpop.f32.mrf.mxu0
    %v711 = vadd.f32 0.0, %v710
    %712 = vmatmul.f32.gmra.mxu0 %v691
    %v713 = vpop.f32.mrf.mxu0
    %v714 = vadd.f32 0.0, %v713
    %715 = vdwg.mxu0
    %v717 = vsel %vm555, %v608, 0
    %v720 = vsel %vm555, %v609, 0
    %722 = vmatpush.msra.mxu0 0.0
    %723 = vmatpush.msra.mxu0 0.0
    %724 = vmatpush.msra.mxu0 0.0
    %725 = vmatpush.msra.mxu0 0.0
    %726 = vmatpush.msra.mxu0 0.0
    %727 = vmatpush.msra.mxu0 0.0
    %728 = vmatpush.msra.mxu0 0.0
    %729 = vmatpush.msra.mxu0 0.0
    %730 = vmatpush.msra.mxu0 0.0
    %731 = vmatpush.msra.mxu0 0.0
    %732 = vmatpush.msra.mxu0 0.0
    %733 = vmatpush.msra.mxu0 0.0
    %734 = vmatpush.msra.mxu0 0.0
    %735 = vmatpush.msra.mxu0 0.0
    %736 = vmatpush.msra.mxu0 %v612
    %737 = vmatpush.msra.mxu0 %v611
    %738 = vmatmul.f32.gmra.mxu0 %v717
    %v739 = vpop.f32.mrf.mxu0
    %v740 = vadd.f32 %v711, %v739
    %741 = vmatmul.f32.gmra.mxu0 %v720
    %v742 = vpop.f32.mrf.mxu0
    %v743 = vadd.f32 %v714, %v742
    %744 = vdwg.mxu0
    %v745 = vld [vmem:[%s5] sm:$0x1]
    %v747 = vperm.slane %v745, 0
    %v749 = vadd.f32 %v740, %v747
    %v750 = vadd.f32 %v743, %v747
    %vm751 = vcmp.gt.f32.partialorder %v749, 0.0
    %vm752 = vcmp.gt.f32.partialorder %v750, 0.0
    %v753 = vmin.f32 %v749, 0.0
    %v754 = vmin.f32 %v750, 0.0
    %v755 = vmul.f32 %v753, 1.442695
    %v756 = vpow.pop %v755
    %v757 = vmul.f32 %v754, 1.442695
    %v758 = vpow.pop %v757
    %v759 = vsub.f32 %v756, 1.0
    %v760 = vsub.f32 %v758, 1.0
    %v761 = vsel %vm751, %v749, %v759
    %v762 = vsel %vm752, %v750, %v760
    %v763 = vld [vmem:[%s7] sm:$0xff]
    %v764 = vld [vmem:[%s7 + $0x8] sm:$0xff]
    %v765 = vld [vmem:[%s7 + $0x10] sm:$0xff]
    %v766 = vld [vmem:[%s7 + $0x18] sm:$0xff]
    %v767 = vld [vmem:[%s7 + $0x20] sm:$0xff]
    %v768 = vld [vmem:[%s7 + $0x28] sm:$0xff]
    %v769 = vld [vmem:[%s7 + $0x30] sm:$0xff]
    %v770 = vld [vmem:[%s7 + $0x38] sm:$0xff]
    %v771 = vld [vmem:[%s7 + $0x40] sm:$0xff]
    %v772 = vld [vmem:[%s7 + $0x48] sm:$0xff]
    %v773 = vld [vmem:[%s7 + $0x50] sm:$0xff]
    %v774 = vld [vmem:[%s7 + $0x58] sm:$0xff]
    %v775 = vld [vmem:[%s7 + $0x60] sm:$0xff]
    %v776 = vld [vmem:[%s7 + $0x68] sm:$0xff]
    %v777 = vld [vmem:[%s7 + $0x70] sm:$0xff]
    %v778 = vld [vmem:[%s7 + $0x78] sm:$0xff]
    %779 = vmatpush.msra.mxu0 %v778
    %780 = vmatpush.msra.mxu0 %v777
    %781 = vmatpush.msra.mxu0 %v776
    %782 = vmatpush.msra.mxu0 %v775
    %783 = vmatpush.msra.mxu0 %v774
    %784 = vmatpush.msra.mxu0 %v773
    %785 = vmatpush.msra.mxu0 %v772
    %786 = vmatpush.msra.mxu0 %v771
    %787 = vmatpush.msra.mxu0 %v770
    %788 = vmatpush.msra.mxu0 %v769
    %789 = vmatpush.msra.mxu0 %v768
    %790 = vmatpush.msra.mxu0 %v767
    %791 = vmatpush.msra.mxu0 %v766
    %792 = vmatpush.msra.mxu0 %v765
    %793 = vmatpush.msra.mxu0 %v764
    %794 = vmatpush.msra.mxu0 %v763
    %795 = vmatmul.f32.gmra.mxu0 %v761
    %v796 = vpop.f32.mrf.mxu0
    %v797 = vadd.f32 0.0, %v796
    %798 = vmatmul.f32.gmra.mxu0 %v762
    %v799 = vpop.f32.mrf.mxu0
    %v800 = vadd.f32 0.0, %v799
    %801 = vdwg.mxu0
    %v802 = vld [vmem:[%s8] sm:$0xff]
    %v803 = vld [vmem:[%s8 + $0x8] sm:$0xff]
    %v804 = vld [vmem:[%s8 + $0x10] sm:$0xff]
    %v805 = vld [vmem:[%s8 + $0x18] sm:$0xff]
    %v806 = vld [vmem:[%s8 + $0x20] sm:$0xff]
    %v807 = vld [vmem:[%s8 + $0x28] sm:$0xff]
    %v808 = vld [vmem:[%s8 + $0x30] sm:$0xff]
    %v809 = vld [vmem:[%s8 + $0x38] sm:$0xff]
    %v810 = vld [vmem:[%s8 + $0x40] sm:$0xff]
    %v811 = vld [vmem:[%s8 + $0x48] sm:$0xff]
    %v812 = vld [vmem:[%s8 + $0x50] sm:$0xff]
    %v813 = vld [vmem:[%s8 + $0x58] sm:$0xff]
    %v814 = vld [vmem:[%s8 + $0x60] sm:$0xff]
    %v815 = vld [vmem:[%s8 + $0x68] sm:$0xff]
    %v816 = vld [vmem:[%s8 + $0x70] sm:$0xff]
    %v817 = vld [vmem:[%s8 + $0x78] sm:$0xff]
    %v818 = vld [vmem:[%s9] sm:$0x3]
    %v819 = vld [vmem:[%s10] sm:$0x3]
    %v820 = vld [vmem:[%s12] sm:$0xff]
    %821 = vmatpush.msra.mxu0 %v817
    %822 = vmatpush.msra.mxu0 %v816
    %823 = vmatpush.msra.mxu0 %v815
    %824 = vmatpush.msra.mxu0 %v814
    %825 = vmatpush.msra.mxu0 %v813
    %826 = vmatpush.msra.mxu0 %v812
    %827 = vmatpush.msra.mxu0 %v811
    %828 = vmatpush.msra.mxu0 %v810
    %829 = vmatpush.msra.mxu0 %v809
    %830 = vmatpush.msra.mxu0 %v808
    %831 = vmatpush.msra.mxu0 %v807
    %832 = vmatpush.msra.mxu0 %v806
    %833 = vmatpush.msra.mxu0 %v805
    %834 = vmatpush.msra.mxu0 %v804
    %835 = vmatpush.msra.mxu0 %v803
    %836 = vmatpush.msra.mxu0 %v802
    %837 = vmatmul.f32.gmra.mxu0 %v797
    %v838 = vpop.f32.mrf.mxu0
    %v839 = vadd.f32 0.0, %v838
    %840 = vmatmul.f32.gmra.mxu0 %v800
    %v841 = vpop.f32.mrf.mxu0
    %842 = vdwg.mxu0
    %843 = vmatpush.xpose.msra.mxu0 0.0
    %844 = vmatpush.xpose.msra.mxu0 0.0
    %845 = vmatpush.xpose.msra.mxu0 0.0
    %846 = vmatpush.xpose.msra.mxu0 0.0
    %847 = vmatpush.xpose.msra.mxu0 0.0
    %848 = vmatpush.xpose.msra.mxu0 0.0
    %849 = vmatpush.xpose.msra.mxu0 0.0
    %850 = vmatpush.xpose.msra.mxu0 0.0
    %851 = vmatpush.xpose.msra.mxu0 0.0
    %852 = vmatpush.xpose.msra.mxu0 0.0
    %853 = vmatpush.xpose.msra.mxu0 0.0
    %854 = vmatpush.xpose.msra.mxu0 0.0
    %855 = vmatpush.xpose.msra.mxu0 0.0
    %856 = vmatpush.xpose.msra.mxu0 0.0
    %857 = vmatpush.xpose.msra.mxu0 %v800
    %858 = vmatpush.xpose.msra.mxu0 %v797
    %859 = vmatmul.f32.gmra.mxu0 %v818
    %v860 = vpop.f32.mrf.mxu0
    %v861 = vadd.f32 0.0, %v860
    %862 = vdwg.mxu0
    %vm863 = vcmp.gt.f32.partialorder %v820, 0.0
    %865 = vset.pattern.permute.xlu0 0
    %866 = vperm.xlu0 %865, %v839
    %v867 = vpop.permute.xlu0 %866
    %v869 = vperm.slane %v861, 0
    %v870 = vadd.f32 %v867, %v869
    %v871 = vmul.f32 %v870, 0.2
    %v872 = vmax.f32 %v870, %v871
    %v873 = vsel %vm863, %v872, -1e+30
    %v874 = vsel %vm555, %v873, -inf
    %875 = vmax.xlane.f32.xlu0 %v874
    %v876 = vpop.xlane.xlu0 %875
    %v877 = vsub.f32 %v873, %v876
    %v878 = vmul.f32 %v877, 1.442695
    %v879 = vpow.pop %v878
    %v880 = vsel %vm863, %v879, 0.0
    %v881 = vsel %vm555, %v880, 0.0
    %882 = vadd.xlane.f32.xlu0 %v881
    %v883 = vpop.xlane.xlu0 %882
    %v884 = vadd.f32 %v883, 1e-20
    %v885 = vrcp.pop %v884
    %v886 = vmul.f32 %v884, %v885
    %v887 = vsub.f32 1.0, %v886
    %v888 = vmul.f32 %v885, %v887
    %v889 = vadd.f32 %v885, %v888
    %vm890 = vweird.f32 %v884
    %vm891 = vweird.f32 %v885
    %vm892 = vmor %vm890, %vm891
    %v893 = vsel %vm892, %v885, %v889
    %v894 = vand.u32 2147483647, %v884
    %vm895 = vcmp.eq.f32.partialorder %v894, 8.507059e+37
    %v896 = vand.u32 %v884, 2147483648
    %v897 = vor.u32 1.1754944e-38, %v896
    %v898 = vsel %vm895, %v897, %v893
    %v899 = vmul.f32 1.0, %v898
    %v900 = vmul.f32 %v880, %v899
    %v901 = vperm.slane %v819, 0
    %v902 = vmul.f32 %v797, %v901
    %v903 = vmul.f32 %v800, %v901
    %904 = vset.pattern.permute.xlu0 1
    %905 = vperm.xlu0 %904, %v839
    %v906 = vpop.permute.xlu0 %905
    %v908 = vperm.slane %v861, 1
    %v909 = vadd.f32 %v906, %v908
    %v910 = vmul.f32 %v909, 0.2
    %v911 = vmax.f32 %v909, %v910
    %v912 = vsel %vm863, %v911, -1e+30
    %v913 = vsel %vm555, %v912, -inf
    %914 = vmax.xlane.f32.xlu0 %v913
    %v915 = vpop.xlane.xlu0 %914
    %v916 = vsub.f32 %v912, %v915
    %v917 = vmul.f32 %v916, 1.442695
    %v918 = vpow.pop %v917
    %v919 = vsel %vm863, %v918, 0.0
    %v920 = vsel %vm555, %v919, 0.0
    %921 = vadd.xlane.f32.xlu0 %v920
    %v922 = vpop.xlane.xlu0 %921
    %v923 = vadd.f32 %v922, 1e-20
    %v924 = vrcp.pop %v923
    %v925 = vmul.f32 %v923, %v924
    %v926 = vsub.f32 1.0, %v925
    %v927 = vmul.f32 %v924, %v926
    %v928 = vadd.f32 %v924, %v927
    %vm929 = vweird.f32 %v923
    %vm930 = vweird.f32 %v924
    %vm931 = vmor %vm929, %vm930
    %v932 = vsel %vm931, %v924, %v928
    %v933 = vand.u32 2147483647, %v923
    %vm934 = vcmp.eq.f32.partialorder %v933, 8.507059e+37
    %v935 = vand.u32 %v923, 2147483648
    %v936 = vor.u32 1.1754944e-38, %v935
    %v937 = vsel %vm934, %v936, %v932
    %v938 = vmul.f32 1.0, %v937
    %v939 = vmul.f32 %v919, %v938
    %v940 = vperm.slane %v819, 1
    %v941 = vmul.f32 %v797, %v940
    %v942 = vmul.f32 %v800, %v940
    %v944 = vsel %vm555, %v939, 0
    %946 = vmatpush.msra.mxu0 0.0
    %947 = vmatpush.msra.mxu0 0.0
    %948 = vmatpush.msra.mxu0 0.0
    %949 = vmatpush.msra.mxu0 0.0
    %950 = vmatpush.msra.mxu0 0.0
    %951 = vmatpush.msra.mxu0 0.0
    %952 = vmatpush.msra.mxu0 0.0
    %953 = vmatpush.msra.mxu0 0.0
    %954 = vmatpush.msra.mxu0 0.0
    %955 = vmatpush.msra.mxu0 0.0
    %956 = vmatpush.msra.mxu0 0.0
    %957 = vmatpush.msra.mxu0 0.0
    %958 = vmatpush.msra.mxu0 0.0
    %959 = vmatpush.msra.mxu0 0.0
    %960 = vmatpush.msra.mxu0 %v942
    %961 = vmatpush.msra.mxu0 %v941
    %962 = vmatmul.f32.gmra.mxu0 %v944
    %v963 = vpop.f32.mrf.mxu0
    %v964 = vadd.f32 0.0, %v963
    %965 = vdwg.mxu0
    %v967 = vsel %vm555, %v900, 0
    %969 = vmatpush.msra.mxu0 0.0
    %970 = vmatpush.msra.mxu0 0.0
    %971 = vmatpush.msra.mxu0 0.0
    %972 = vmatpush.msra.mxu0 0.0
    %973 = vmatpush.msra.mxu0 0.0
    %974 = vmatpush.msra.mxu0 0.0
    %975 = vmatpush.msra.mxu0 0.0
    %976 = vmatpush.msra.mxu0 0.0
    %977 = vmatpush.msra.mxu0 0.0
    %978 = vmatpush.msra.mxu0 0.0
    %979 = vmatpush.msra.mxu0 0.0
    %980 = vmatpush.msra.mxu0 0.0
    %981 = vmatpush.msra.mxu0 0.0
    %982 = vmatpush.msra.mxu0 0.0
    %983 = vmatpush.msra.mxu0 %v903
    %984 = vmatpush.msra.mxu0 %v902
    %985 = vmatmul.f32.gmra.mxu0 %v967
    %v986 = vpop.f32.mrf.mxu0
    %v987 = vadd.f32 %v964, %v986
    %988 = vdwg.mxu0
    %v989 = vld [vmem:[%s11] sm:$0x1]
    %v991 = vperm.slane %v989, 0
    %v993 = vadd.f32 %v987, %v991
    %v994 = vld [vmem:[%s13] sm:$0xff]
    %v995 = vld [vmem:[%s13 + $0x8] sm:$0xff]
    %v996 = vld [vmem:[%s13 + $0x10] sm:$0xff]
    %v997 = vld [vmem:[%s13 + $0x18] sm:$0xff]
    %v998 = vld [vmem:[%s13 + $0x20] sm:$0xff]
    %v999 = vld [vmem:[%s13 + $0x28] sm:$0xff]
    %v1000 = vld [vmem:[%s13 + $0x30] sm:$0xff]
    %v1001 = vld [vmem:[%s13 + $0x38] sm:$0xff]
    %v1002 = vld [vmem:[%s13 + $0x40] sm:$0xff]
    %v1003 = vld [vmem:[%s13 + $0x48] sm:$0xff]
    %v1004 = vld [vmem:[%s13 + $0x50] sm:$0xff]
    %v1005 = vld [vmem:[%s13 + $0x58] sm:$0xff]
    %v1006 = vld [vmem:[%s13 + $0x60] sm:$0xff]
    %v1007 = vld [vmem:[%s13 + $0x68] sm:$0xff]
    %v1008 = vld [vmem:[%s13 + $0x70] sm:$0xff]
    %v1009 = vld [vmem:[%s13 + $0x78] sm:$0xff]
    %1010 = vmatpush.msra.mxu0 %v1009
    %1011 = vmatpush.msra.mxu0 %v1008
    %1012 = vmatpush.msra.mxu0 %v1007
    %1013 = vmatpush.msra.mxu0 %v1006
    %1014 = vmatpush.msra.mxu0 %v1005
    %1015 = vmatpush.msra.mxu0 %v1004
    %1016 = vmatpush.msra.mxu0 %v1003
    %1017 = vmatpush.msra.mxu0 %v1002
    %1018 = vmatpush.msra.mxu0 %v1001
    %1019 = vmatpush.msra.mxu0 %v1000
    %1020 = vmatpush.msra.mxu0 %v999
    %1021 = vmatpush.msra.mxu0 %v998
    %1022 = vmatpush.msra.mxu0 %v997
    %1023 = vmatpush.msra.mxu0 %v996
    %1024 = vmatpush.msra.mxu0 %v995
    %1025 = vmatpush.msra.mxu0 %v994
    %1026 = vmatmul.f32.gmra.mxu0 %v993
    %v1027 = vpop.f32.mrf.mxu0
    %v1028 = vadd.f32 0.0, %v1027
    %1029 = vdwg.mxu0
    %1030 = vst [vmem:[#allocation2] sm:$0xff] %v1028
    // Predicated region
    $region58: #{tpu_custom_call.1} parent=1 // pred_check
      _
    $region59: #{tpu_custom_call.1} parent=1 // pred_check_branch
      %1032 = sbr.rel (0) target = $region61
    $region60: #{tpu_custom_call.1} parent=1 // pred_region
      %1034 = vsyncadd [#allocation3], 0
      %s1036 = sshll.u32 [#allocation2], 4
      %s1037 = int_to_ptr.vmem [resolvable:$true] %s1036
      %s1038 = sshll.u32 %s14, 4
      %s1039 = int_to_ptr.hbm [resolvable:$true] %s1038
      %1041 = dma.vmem_to_hbm [thread:$0]  %s1037, 128, %s1039, [#allocation3]
    $region61: #{tpu_custom_call.1} parent=1 // pred_fallthru
      _
    // Predicated region
    $region62: #{tpu_custom_call.1} parent=1 // pred_check
      _
    $region63: #{tpu_custom_call.1} parent=1 // pred_check_branch
      %1043 = sbr.rel (0) target = $region65
    $region64: #{tpu_custom_call.1} parent=1 // pred_region
      %1045 = dma.done [#allocation3], 128
    $region65: #{tpu_custom_call.1} parent=1 // pred_fallthru
      _
    %1046 = vsyncpa [#allocation3], 1

</llo_original>
